<compile_context>
chip_gen: v7x
topology: tpu7x:2x2x1
jax: 0.10.0
libtpu: 0.0.40
codegen_flags: <defaults>
</compile_context>

<pallas_src>
import numpy as np

import jax
import jax.numpy as jnp
from jax import lax
from jax.experimental import pallas as pl
from jax.experimental.pallas import tpu as pltpu

# ---------------- configuration (small, consistent with the module) ----------
BATCH = 2
SEQ = 8
EMBED = 32
NUM_HEADS = 4
HEAD_DIM = EMBED // NUM_HEADS
FFN_DIM = 64
LN_EPS = 1e-12          # module default layernorm_eps


# ---------------- Pallas kernel -----------------------------------------------
def _layernorm(x, gamma, beta, eps):
    mu = jnp.mean(x, axis=-1, keepdims=True)
    var = jnp.mean((x - mu) ** 2, axis=-1, keepdims=True)
    return (x - mu) * lax.rsqrt(var + eps) * gamma + beta


def encoder_layer_kernel(x_ref,
                         ln1g_ref, ln1b_ref,
                         wqkv_ref, bqkv_ref,
                         wo_ref, bo_ref,
                         ln2g_ref, ln2b_ref,
                         w1_ref, b1_ref,
                         w2_ref, b2_ref,
                         y_ref):
    B, S, E, H, D = BATCH, SEQ, EMBED, NUM_HEADS, HEAD_DIM
    x = x_ref[...]                                          # (B*S, E)

    # additive causal mask (0 visible / -1e30 masked), built once for all (b, h)
    row = lax.broadcasted_iota(jnp.int32, (S, S), 0)
    col = lax.broadcasted_iota(jnp.int32, (S, S), 1)
    mask_add = jnp.where(col <= row, 0.0, -1e30).astype(jnp.float32)[None, :, :]  # (1,S,S)

    # ---- LayerNorm 1 ----
    hn = _layernorm(x, ln1g_ref[...], ln1b_ref[...], LN_EPS)

    # ---- fused QKV projection (1/sqrt(d) folded into the Q columns host-side) ----
    qkv = jnp.dot(hn, wqkv_ref[...],
                  preferred_element_type=jnp.float32) + bqkv_ref[...]     # (B*S, 3E)

    # ---- head split: static lane slabs gathered onto a leading batch axis ----
    # (all of qkv's 96 lanes live in one 128-lane vreg tile, so q|k|v column
    #  order is irrelevant; every slice below is an 8-lane-aligned select.)
    def gather_heads(base):
        return jnp.concatenate(
            [qkv[:, base + h * D: base + (h + 1) * D].reshape(B, S, D) for h in range(H)],
            axis=0)                                          # (H*B, S, D)

    q = gather_heads(0)
    k = gather_heads(E)
    v = gather_heads(2 * E)

    # ---- one batched attention over all (head, batch) pairs ----
    s = jnp.einsum('bqd,bkd->bqk', q, k,
                   preferred_element_type=jnp.float32)       # (H*B, S, S)
    s = s + mask_add
    # scores are bounded -> no row-max subtraction needed (see header note)
    p = jnp.exp(s)
    p = p * pl.reciprocal(jnp.sum(p, axis=-1, keepdims=True), approx=True)
    ctx = jnp.einsum('bqk,bkd->bqd', p, v,
                     preferred_element_type=jnp.float32)     # (H*B, S, D)

    # ---- merge heads back onto lanes; single (B*S,E)@(E,E) output projection ----
    ctx_full = jnp.concatenate(
        [ctx[h * B:(h + 1) * B].reshape(B * S, D) for h in range(H)], axis=-1)  # (B*S, E)
    attn_out = jnp.dot(ctx_full, wo_ref[...],
                       preferred_element_type=jnp.float32) + bo_ref[...]

    # ---- residual 1 (dropout1 = identity in eval) ----
    h1 = x + attn_out

    # ---- LayerNorm 2 + FFN (tanh GELU -> EUP slot) ----
    hn2 = _layernorm(h1, ln2g_ref[...], ln2b_ref[...], LN_EPS)
    f = jnp.dot(hn2, w1_ref[...], preferred_element_type=jnp.float32) + b1_ref[...]
    # TODO(synk): tanh GELU deviates from torch F.gelu (erf) by <1e-4 at these
    # magnitudes; switch approximate=False back on if bit-level parity is required.
    f = jax.nn.gelu(f, approximate=True)
    f = jnp.dot(f, w2_ref[...], preferred_element_type=jnp.float32) + b2_ref[...]

    # ---- residual 2 (dropout2 = identity in eval) ----
    y_ref[...] = h1 + f


# ---------------- wrapper ------------------------------------------------------
def _full_spec(shape):
    # full-array block (satisfies the "equal full array dims" rule)
    return pl.BlockSpec(shape, lambda i: (0,) * len(shape))


def transformer_encoder_layer(x, params):
    """Eval-mode forward of the TransformerEncoderLayer module (one pallas_call)."""
    (ln1g, ln1b, wq, bq, wk, bk, wv, bv, wo, bo,
     ln2g, ln2b, w1, b1, w2, b2) = params
    B, S, E = x.shape
    scale = jnp.float32(HEAD_DIM ** (-0.5))

    # fuse Q|K|V; fold the attention scale into the Q weights/bias (host-side, free)
    wqkv = jnp.concatenate([wq * scale, wk, wv], axis=1)     # (E, 3E)
    bqkv = jnp.concatenate([bq * scale, bk, bv], axis=1)     # (1, 3E)

    x2 = x.reshape(B * S, E)
    args = (x2, ln1g, ln1b, wqkv, bqkv, wo, bo, ln2g, ln2b, w1, b1, w2, b2)

    out = pl.pallas_call(
        encoder_layer_kernel,
        out_shape=jax.ShapeDtypeStruct((B * S, E), jnp.float32),
        grid=(1,),
        in_specs=[_full_spec(a.shape) for a in args],
        out_specs=_full_spec((B * S, E)),
        compiler_params=pltpu.CompilerParams(dimension_semantics=("arbitrary",)),
    )(*args)
    return out.reshape(B, S, E)


# ---------------- pure-JAX reference (mirrors the PyTorch eval forward) --------
def ref_encoder_layer(x, params):
    (ln1g, ln1b, wq, bq, wk, bk, wv, bv, wo, bo,
     ln2g, ln2b, w1, b1, w2, b2) = params

    def ln(t, g, b):
        mu = t.mean(-1, keepdims=True)
        var = ((t - mu) ** 2).mean(-1, keepdims=True)
        return (t - mu) / jnp.sqrt(var + LN_EPS) * g[0] + b[0]

    B, S, E = x.shape
    h = ln(x, ln1g, ln1b)
    q = (h @ wq + bq[0]).reshape(B, S, NUM_HEADS, HEAD_DIM).transpose(0, 2, 1, 3)
    k = (h @ wk + bk[0]).reshape(B, S, NUM_HEADS, HEAD_DIM).transpose(0, 2, 1, 3)
    v = (h @ wv + bv[0]).reshape(B, S, NUM_HEADS, HEAD_DIM).transpose(0, 2, 1, 3)
    s = jnp.einsum('bhqd,bhkd->bhqk', q, k) * HEAD_DIM ** (-0.5)
    causal = jnp.tril(jnp.ones((S, S), dtype=bool))
    s = jnp.where(causal[None, None], s, -jnp.inf)
    p = jax.nn.softmax(s, axis=-1)
    ctx = jnp.einsum('bhqk,bhkd->bhqd', p, v).transpose(0, 2, 1, 3).reshape(B, S, E)
    h1 = x + (ctx @ wo + bo[0])
    h2 = ln(h1, ln2g, ln2b)
    f = jax.nn.gelu(h2 @ w1 + b1[0], approximate=False) @ w2 + b2[0]
    return h1 + f


# ---------------- deterministic parameter init --------------------------------
def make_params(key):
    keys = jax.random.split(key, 9)
    ln1g = jnp.ones((1, EMBED), jnp.float32)
    ln1b = jnp.zeros((1, EMBED), jnp.float32)
    wq = jax.random.normal(keys[1], (EMBED, EMBED), jnp.float32) * 0.05
    wk = jax.random.normal(keys[2], (EMBED, EMBED), jnp.float32) * 0.05
    wv = jax.random.normal(keys[3], (EMBED, EMBED), jnp.float32) * 0.05
    wo = jax.random.normal(keys[4], (EMBED, EMBED), jnp.float32) * 0.05
    bq = jax.random.normal(keys[5], (1, EMBED), jnp.float32) * 0.01
    bk = jnp.zeros((1, EMBED), jnp.float32)
    bv = jax.random.normal(keys[6], (1, EMBED), jnp.float32) * 0.01
    bo = jnp.zeros((1, EMBED), jnp.float32)
    ln2g = jnp.ones((1, EMBED), jnp.float32)
    ln2b = jnp.zeros((1, EMBED), jnp.float32)
    w1 = jax.random.normal(keys[7], (EMBED, FFN_DIM), jnp.float32) * 0.05
    b1 = jnp.zeros((1, FFN_DIM), jnp.float32)
    w2 = jax.random.normal(keys[8], (FFN_DIM, EMBED), jnp.float32) * 0.05
    b2 = jnp.zeros((1, EMBED), jnp.float32)
    return (ln1g, ln1b, wq, bq, wk, bk, wv, bv, wo, bo,
            ln2g, ln2b, w1, b1, w2, b2)


# ---------------- main ---------------------------------------------------------
if __name__ == "__main__":
    key = jax.random.PRNGKey(0)
    k_x, k_p = jax.random.split(key)
    x = jax.random.normal(k_x, (BATCH, SEQ, EMBED), jnp.float32)
    params = make_params(k_p)

    out = transformer_encoder_layer(x, params)
    out = jax.block_until_ready(out)

    # correctness check against a pure-JAX reference of the PyTorch eval forward
    # (tolerance covers the EUP approx reciprocal, tanh GELU and folded scale)
    with jax.default_matmul_precision("highest"):
        ref = jax.block_until_ready(ref_encoder_layer(x, params))
    np.testing.assert_allclose(np.asarray(out), np.asarray(ref), rtol=2e-3, atol=2e-3)

    print("KERNEL_OK")
</pallas_src>

<mosaic_0001>
module attributes {stable_mosaic.version = 11 : i64} {
  func.func @encoder_layer_kernel(%arg0: i32, %arg1: memref<16x32xf32, #tpu.memory_space<vmem>>, %arg2: memref<1x32xf32, #tpu.memory_space<vmem>>, %arg3: memref<1x32xf32, #tpu.memory_space<vmem>>, %arg4: memref<32x96xf32, #tpu.memory_space<vmem>>, %arg5: memref<1x96xf32, #tpu.memory_space<vmem>>, %arg6: memref<32x32xf32, #tpu.memory_space<vmem>>, %arg7: memref<1x32xf32, #tpu.memory_space<vmem>>, %arg8: memref<1x32xf32, #tpu.memory_space<vmem>>, %arg9: memref<1x32xf32, #tpu.memory_space<vmem>>, %arg10: memref<32x64xf32, #tpu.memory_space<vmem>>, %arg11: memref<1x64xf32, #tpu.memory_space<vmem>>, %arg12: memref<64x32xf32, #tpu.memory_space<vmem>>, %arg13: memref<1x32xf32, #tpu.memory_space<vmem>>, %arg14: memref<16x32xf32, #tpu.memory_space<vmem>>) attributes {dimension_semantics = [#tpu.dimension_semantics<arbitrary>], iteration_bounds = array<i64: 1>, scalar_prefetch = 0 : i64, scratch_operands = 0 : i64, tpu.core_type = #tpu.core_type<tc>, window_params = [{pipeline_mode = #tpu.pipeline_mode<synchronous>, transform_indices = @transform_0, window_bounds = array<i64: 16, 32>}, {pipeline_mode = #tpu.pipeline_mode<synchronous>, transform_indices = @transform_1, window_bounds = array<i64: 1, 32>}, {pipeline_mode = #tpu.pipeline_mode<synchronous>, transform_indices = @transform_2, window_bounds = array<i64: 1, 32>}, {pipeline_mode = #tpu.pipeline_mode<synchronous>, transform_indices = @transform_3, window_bounds = array<i64: 32, 96>}, {pipeline_mode = #tpu.pipeline_mode<synchronous>, transform_indices = @transform_4, window_bounds = array<i64: 1, 96>}, {pipeline_mode = #tpu.pipeline_mode<synchronous>, transform_indices = @transform_5, window_bounds = array<i64: 32, 32>}, {pipeline_mode = #tpu.pipeline_mode<synchronous>, transform_indices = @transform_6, window_bounds = array<i64: 1, 32>}, {pipeline_mode = #tpu.pipeline_mode<synchronous>, transform_indices = @transform_7, window_bounds = array<i64: 1, 32>}, {pipeline_mode = #tpu.pipeline_mode<synchronous>, transform_indices = @transform_8, window_bounds = array<i64: 1, 32>}, {pipeline_mode = #tpu.pipeline_mode<synchronous>, transform_indices = @transform_9, window_bounds = array<i64: 32, 64>}, {pipeline_mode = #tpu.pipeline_mode<synchronous>, transform_indices = @transform_10, window_bounds = array<i64: 1, 64>}, {pipeline_mode = #tpu.pipeline_mode<synchronous>, transform_indices = @transform_11, window_bounds = array<i64: 64, 32>}, {pipeline_mode = #tpu.pipeline_mode<synchronous>, transform_indices = @transform_12, window_bounds = array<i64: 1, 32>}, {pipeline_mode = #tpu.pipeline_mode<synchronous>, transform_indices = @transform_13, window_bounds = array<i64: 16, 32>}]} {
    %c0 = arith.constant 0 : index
    %c0_0 = arith.constant 0 : index
    %0 = vector.load %arg1[%c0, %c0_0] : memref<16x32xf32, #tpu.memory_space<vmem>>, vector<16x32xf32>
    %1 = tpu.iota {dimensions = array<i32: 0>} : vector<8x8xi32>
    %2 = tpu.iota {dimensions = array<i32: 1>} : vector<8x8xi32>
    %3 = arith.cmpi sle, %2, %1 : vector<8x8xi32>
    %cst = arith.constant 0.000000e+00 : f32
    %cst_1 = arith.constant -1.000000e+30 : f32
    %4 = vector.broadcast %cst : f32 to vector<8x8xf32>
    %5 = vector.broadcast %cst_1 : f32 to vector<8x8xf32>
    %6 = arith.select %3, %4, %5 : vector<8x8xi1>, vector<8x8xf32>
    %7 = vector.shape_cast %6 : vector<8x8xf32> to vector<1x8x8xf32>
    %c0_2 = arith.constant 0 : index
    %c0_3 = arith.constant 0 : index
    %8 = vector.load %arg2[%c0_2, %c0_3] : memref<1x32xf32, #tpu.memory_space<vmem>>, vector<1x32xf32>
    %c0_4 = arith.constant 0 : index
    %c0_5 = arith.constant 0 : index
    %9 = vector.load %arg3[%c0_4, %c0_5] : memref<1x32xf32, #tpu.memory_space<vmem>>, vector<1x32xf32>
    %cst_6 = arith.constant dense<0.000000e+00> : vector<16xf32>
    %10 = vector.multi_reduction <add>, %0, %cst_6 [1] : vector<16x32xf32> to vector<16xf32>
    %11 = vector.shape_cast %10 : vector<16xf32> to vector<16x1xf32>
    %cst_7 = arith.constant 3.200000e+01 : f32
    %12 = vector.broadcast %cst_7 : f32 to vector<16x1xf32>
    %13 = arith.divf %11, %12 : vector<16x1xf32>
    %14 = vector.broadcast %13 : vector<16x1xf32> to vector<16x32xf32>
    %15 = arith.subf %0, %14 : vector<16x32xf32>
    %16 = arith.mulf %15, %15 : vector<16x32xf32>
    %cst_8 = arith.constant dense<0.000000e+00> : vector<16xf32>
    %17 = vector.multi_reduction <add>, %16, %cst_8 [1] : vector<16x32xf32> to vector<16xf32>
    %18 = vector.shape_cast %17 : vector<16xf32> to vector<16x1xf32>
    %cst_9 = arith.constant 3.200000e+01 : f32
    %19 = vector.broadcast %cst_9 : f32 to vector<16x1xf32>
    %20 = arith.divf %18, %19 : vector<16x1xf32>
    %21 = vector.broadcast %13 : vector<16x1xf32> to vector<16x32xf32>
    %22 = arith.subf %0, %21 : vector<16x32xf32>
    %cst_10 = arith.constant 9.99999996E-13 : f32
    %23 = vector.broadcast %cst_10 : f32 to vector<16x1xf32>
    %24 = arith.addf %20, %23 : vector<16x1xf32>
    %25 = math.rsqrt %24 : vector<16x1xf32>
    %26 = vector.broadcast %25 : vector<16x1xf32> to vector<16x32xf32>
    %27 = arith.mulf %22, %26 : vector<16x32xf32>
    %28 = vector.broadcast %8 : vector<1x32xf32> to vector<16x32xf32>
    %29 = arith.mulf %27, %28 : vector<16x32xf32>
    %30 = vector.broadcast %9 : vector<1x32xf32> to vector<16x32xf32>
    %31 = arith.addf %29, %30 : vector<16x32xf32>
    %c0_11 = arith.constant 0 : index
    %c0_12 = arith.constant 0 : index
    %32 = vector.load %arg4[%c0_11, %c0_12] : memref<32x96xf32, #tpu.memory_space<vmem>>, vector<32x96xf32>
    %cst_13 = arith.constant dense<0.000000e+00> : vector<16x96xf32>
    %33 = tpu.matmul %31, %32, %cst_13 {dimension_numbers = #tpu.dot_dimension_numbers<[1], [0], [0], [1], [0, 0, 1, 1], [], []>} : vector<16x32xf32>, vector<32x96xf32>, vector<16x96xf32> -> vector<16x96xf32>
    %c0_14 = arith.constant 0 : index
    %c0_15 = arith.constant 0 : index
    %34 = vector.load %arg5[%c0_14, %c0_15] : memref<1x96xf32, #tpu.memory_space<vmem>>, vector<1x96xf32>
    %35 = vector.broadcast %34 : vector<1x96xf32> to vector<16x96xf32>
    %36 = arith.addf %33, %35 : vector<16x96xf32>
    %37 = vector.extract_strided_slice %36 {offsets = [0, 0], sizes = [16, 8], strides = [1, 1]} : vector<16x96xf32> to vector<16x8xf32>
    %38 = vector.shape_cast %37 : vector<16x8xf32> to vector<2x8x8xf32>
    %39 = vector.extract_strided_slice %36 {offsets = [0, 8], sizes = [16, 8], strides = [1, 1]} : vector<16x96xf32> to vector<16x8xf32>
    %40 = vector.shape_cast %39 : vector<16x8xf32> to vector<2x8x8xf32>
    %41 = vector.extract_strided_slice %36 {offsets = [0, 16], sizes = [16, 8], strides = [1, 1]} : vector<16x96xf32> to vector<16x8xf32>
    %42 = vector.shape_cast %41 : vector<16x8xf32> to vector<2x8x8xf32>
    %43 = vector.extract_strided_slice %36 {offsets = [0, 24], sizes = [16, 8], strides = [1, 1]} : vector<16x96xf32> to vector<16x8xf32>
    %44 = vector.shape_cast %43 : vector<16x8xf32> to vector<2x8x8xf32>
    %45 = tpu.concatenate %38, %40, %42, %44 in 0 : vector<2x8x8xf32>, vector<2x8x8xf32>, vector<2x8x8xf32>, vector<2x8x8xf32> -> vector<8x8x8xf32>
    %46 = vector.extract_strided_slice %36 {offsets = [0, 32], sizes = [16, 8], strides = [1, 1]} : vector<16x96xf32> to vector<16x8xf32>
    %47 = vector.shape_cast %46 : vector<16x8xf32> to vector<2x8x8xf32>
    %48 = vector.extract_strided_slice %36 {offsets = [0, 40], sizes = [16, 8], strides = [1, 1]} : vector<16x96xf32> to vector<16x8xf32>
    %49 = vector.shape_cast %48 : vector<16x8xf32> to vector<2x8x8xf32>
    %50 = vector.extract_strided_slice %36 {offsets = [0, 48], sizes = [16, 8], strides = [1, 1]} : vector<16x96xf32> to vector<16x8xf32>
    %51 = vector.shape_cast %50 : vector<16x8xf32> to vector<2x8x8xf32>
    %52 = vector.extract_strided_slice %36 {offsets = [0, 56], sizes = [16, 8], strides = [1, 1]} : vector<16x96xf32> to vector<16x8xf32>
    %53 = vector.shape_cast %52 : vector<16x8xf32> to vector<2x8x8xf32>
    %54 = tpu.concatenate %47, %49, %51, %53 in 0 : vector<2x8x8xf32>, vector<2x8x8xf32>, vector<2x8x8xf32>, vector<2x8x8xf32> -> vector<8x8x8xf32>
    %55 = vector.extract_strided_slice %36 {offsets = [0, 64], sizes = [16, 8], strides = [1, 1]} : vector<16x96xf32> to vector<16x8xf32>
    %56 = vector.shape_cast %55 : vector<16x8xf32> to vector<2x8x8xf32>
    %57 = vector.extract_strided_slice %36 {offsets = [0, 72], sizes = [16, 8], strides = [1, 1]} : vector<16x96xf32> to vector<16x8xf32>
    %58 = vector.shape_cast %57 : vector<16x8xf32> to vector<2x8x8xf32>
    %59 = vector.extract_strided_slice %36 {offsets = [0, 80], sizes = [16, 8], strides = [1, 1]} : vector<16x96xf32> to vector<16x8xf32>
    %60 = vector.shape_cast %59 : vector<16x8xf32> to vector<2x8x8xf32>
    %61 = vector.extract_strided_slice %36 {offsets = [0, 88], sizes = [16, 8], strides = [1, 1]} : vector<16x96xf32> to vector<16x8xf32>
    %62 = vector.shape_cast %61 : vector<16x8xf32> to vector<2x8x8xf32>
    %63 = tpu.concatenate %56, %58, %60, %62 in 0 : vector<2x8x8xf32>, vector<2x8x8xf32>, vector<2x8x8xf32>, vector<2x8x8xf32> -> vector<8x8x8xf32>
    "tpu.trace_start"() <{level = 10 : i32, message = "bqd,bkd->bqk"}> : () -> ()
    %cst_16 = arith.constant dense<0.000000e+00> : vector<8x8x8xf32>
    %64 = tpu.matmul %45, %54, %cst_16 {dimension_numbers = #tpu.dot_dimension_numbers<[2], [2], [1], [1], [0, 0, 0, 1, 1, 1], [0], [0]>} : vector<8x8x8xf32>, vector<8x8x8xf32>, vector<8x8x8xf32> -> vector<8x8x8xf32>
    "tpu.trace_stop"() : () -> ()
    %65 = vector.broadcast %7 : vector<1x8x8xf32> to vector<8x8x8xf32>
    %66 = arith.addf %64, %65 : vector<8x8x8xf32>
    %67 = math.exp %66 : vector<8x8x8xf32>
    %cst_17 = arith.constant dense<0.000000e+00> : vector<8x8xf32>
    %68 = vector.multi_reduction <add>, %67, %cst_17 [2] : vector<8x8x8xf32> to vector<8x8xf32>
    %69 = vector.shape_cast %68 : vector<8x8xf32> to vector<8x8x1xf32>
    %70 = tpu.reciprocal %69 {approx = true} : vector<8x8x1xf32> -> vector<8x8x1xf32>
    %71 = vector.broadcast %70 : vector<8x8x1xf32> to vector<8x8x8xf32>
    %72 = arith.mulf %67, %71 : vector<8x8x8xf32>
    "tpu.trace_start"() <{level = 10 : i32, message = "bqk,bkd->bqd"}> : () -> ()
    %cst_18 = arith.constant dense<0.000000e+00> : vector<8x8x8xf32>
    %73 = tpu.matmul %72, %63, %cst_18 {dimension_numbers = #tpu.dot_dimension_numbers<[2], [1], [1], [2], [0, 0, 0, 1, 1, 2], [0], [0]>} : vector<8x8x8xf32>, vector<8x8x8xf32>, vector<8x8x8xf32> -> vector<8x8x8xf32>
    "tpu.trace_stop"() : () -> ()
    %74 = vector.extract_strided_slice %73 {offsets = [0, 0, 0], sizes = [2, 8, 8], strides = [1, 1, 1]} : vector<8x8x8xf32> to vector<2x8x8xf32>
    %75 = vector.shape_cast %74 : vector<2x8x8xf32> to vector<16x8xf32>
    %76 = vector.extract_strided_slice %73 {offsets = [2, 0, 0], sizes = [2, 8, 8], strides = [1, 1, 1]} : vector<8x8x8xf32> to vector<2x8x8xf32>
    %77 = vector.shape_cast %76 : vector<2x8x8xf32> to vector<16x8xf32>
    %78 = vector.extract_strided_slice %73 {offsets = [4, 0, 0], sizes = [2, 8, 8], strides = [1, 1, 1]} : vector<8x8x8xf32> to vector<2x8x8xf32>
    %79 = vector.shape_cast %78 : vector<2x8x8xf32> to vector<16x8xf32>
    %80 = vector.extract_strided_slice %73 {offsets = [6, 0, 0], sizes = [2, 8, 8], strides = [1, 1, 1]} : vector<8x8x8xf32> to vector<2x8x8xf32>
    %81 = vector.shape_cast %80 : vector<2x8x8xf32> to vector<16x8xf32>
    %82 = tpu.concatenate %75, %77, %79, %81 in 1 : vector<16x8xf32>, vector<16x8xf32>, vector<16x8xf32>, vector<16x8xf32> -> vector<16x32xf32>
    %c0_19 = arith.constant 0 : index
    %c0_20 = arith.constant 0 : index
    %83 = vector.load %arg6[%c0_19, %c0_20] : memref<32x32xf32, #tpu.memory_space<vmem>>, vector<32x32xf32>
    %cst_21 = arith.constant dense<0.000000e+00> : vector<16x32xf32>
    %84 = tpu.matmul %82, %83, %cst_21 {dimension_numbers = #tpu.dot_dimension_numbers<[1], [0], [0], [1], [0, 0, 1, 1], [], []>} : vector<16x32xf32>, vector<32x32xf32>, vector<16x32xf32> -> vector<16x32xf32>
    %c0_22 = arith.constant 0 : index
    %c0_23 = arith.constant 0 : index
    %85 = vector.load %arg7[%c0_22, %c0_23] : memref<1x32xf32, #tpu.memory_space<vmem>>, vector<1x32xf32>
    %86 = vector.broadcast %85 : vector<1x32xf32> to vector<16x32xf32>
    %87 = arith.addf %84, %86 : vector<16x32xf32>
    %88 = arith.addf %0, %87 : vector<16x32xf32>
    %c0_24 = arith.constant 0 : index
    %c0_25 = arith.constant 0 : index
    %89 = vector.load %arg8[%c0_24, %c0_25] : memref<1x32xf32, #tpu.memory_space<vmem>>, vector<1x32xf32>
    %c0_26 = arith.constant 0 : index
    %c0_27 = arith.constant 0 : index
    %90 = vector.load %arg9[%c0_26, %c0_27] : memref<1x32xf32, #tpu.memory_space<vmem>>, vector<1x32xf32>
    %cst_28 = arith.constant dense<0.000000e+00> : vector<16xf32>
    %91 = vector.multi_reduction <add>, %88, %cst_28 [1] : vector<16x32xf32> to vector<16xf32>
    %92 = vector.shape_cast %91 : vector<16xf32> to vector<16x1xf32>
    %cst_29 = arith.constant 3.200000e+01 : f32
    %93 = vector.broadcast %cst_29 : f32 to vector<16x1xf32>
    %94 = arith.divf %92, %93 : vector<16x1xf32>
    %95 = vector.broadcast %94 : vector<16x1xf32> to vector<16x32xf32>
    %96 = arith.subf %88, %95 : vector<16x32xf32>
    %97 = arith.mulf %96, %96 : vector<16x32xf32>
    %cst_30 = arith.constant dense<0.000000e+00> : vector<16xf32>
    %98 = vector.multi_reduction <add>, %97, %cst_30 [1] : vector<16x32xf32> to vector<16xf32>
    %99 = vector.shape_cast %98 : vector<16xf32> to vector<16x1xf32>
    %cst_31 = arith.constant 3.200000e+01 : f32
    %100 = vector.broadcast %cst_31 : f32 to vector<16x1xf32>
    %101 = arith.divf %99, %100 : vector<16x1xf32>
    %102 = vector.broadcast %94 : vector<16x1xf32> to vector<16x32xf32>
    %103 = arith.subf %88, %102 : vector<16x32xf32>
    %cst_32 = arith.constant 9.99999996E-13 : f32
    %104 = vector.broadcast %cst_32 : f32 to vector<16x1xf32>
    %105 = arith.addf %101, %104 : vector<16x1xf32>
    %106 = math.rsqrt %105 : vector<16x1xf32>
    %107 = vector.broadcast %106 : vector<16x1xf32> to vector<16x32xf32>
    %108 = arith.mulf %103, %107 : vector<16x32xf32>
    %109 = vector.broadcast %89 : vector<1x32xf32> to vector<16x32xf32>
    %110 = arith.mulf %108, %109 : vector<16x32xf32>
    %111 = vector.broadcast %90 : vector<1x32xf32> to vector<16x32xf32>
    %112 = arith.addf %110, %111 : vector<16x32xf32>
    %c0_33 = arith.constant 0 : index
    %c0_34 = arith.constant 0 : index
    %113 = vector.load %arg10[%c0_33, %c0_34] : memref<32x64xf32, #tpu.memory_space<vmem>>, vector<32x64xf32>
    %cst_35 = arith.constant dense<0.000000e+00> : vector<16x64xf32>
    %114 = tpu.matmul %112, %113, %cst_35 {dimension_numbers = #tpu.dot_dimension_numbers<[1], [0], [0], [1], [0, 0, 1, 1], [], []>} : vector<16x32xf32>, vector<32x64xf32>, vector<16x64xf32> -> vector<16x64xf32>
    %c0_36 = arith.constant 0 : index
    %c0_37 = arith.constant 0 : index
    %115 = vector.load %arg11[%c0_36, %c0_37] : memref<1x64xf32, #tpu.memory_space<vmem>>, vector<1x64xf32>
    %116 = vector.broadcast %115 : vector<1x64xf32> to vector<16x64xf32>
    %117 = arith.addf %114, %116 : vector<16x64xf32>
    %118 = arith.mulf %117, %117 : vector<16x64xf32>
    %119 = arith.mulf %117, %118 : vector<16x64xf32>
    %cst_38 = arith.constant 4.471500e-02 : f32
    %120 = vector.broadcast %cst_38 : f32 to vector<16x64xf32>
    %121 = arith.mulf %120, %119 : vector<16x64xf32>
    %122 = arith.addf %117, %121 : vector<16x64xf32>
    %cst_39 = arith.constant 0.797884583 : f32
    %123 = vector.broadcast %cst_39 : f32 to vector<16x64xf32>
    %124 = arith.mulf %123, %122 : vector<16x64xf32>
    %125 = math.tanh %124 : vector<16x64xf32>
    %cst_40 = arith.constant 1.000000e+00 : f32
    %126 = vector.broadcast %cst_40 : f32 to vector<16x64xf32>
    %127 = arith.addf %126, %125 : vector<16x64xf32>
    %cst_41 = arith.constant 5.000000e-01 : f32
    %128 = vector.broadcast %cst_41 : f32 to vector<16x64xf32>
    %129 = arith.mulf %128, %127 : vector<16x64xf32>
    %130 = arith.mulf %117, %129 : vector<16x64xf32>
    %c0_42 = arith.constant 0 : index
    %c0_43 = arith.constant 0 : index
    %131 = vector.load %arg12[%c0_42, %c0_43] : memref<64x32xf32, #tpu.memory_space<vmem>>, vector<64x32xf32>
    %cst_44 = arith.constant dense<0.000000e+00> : vector<16x32xf32>
    %132 = tpu.matmul %130, %131, %cst_44 {dimension_numbers = #tpu.dot_dimension_numbers<[1], [0], [0], [1], [0, 0, 1, 1], [], []>} : vector<16x64xf32>, vector<64x32xf32>, vector<16x32xf32> -> vector<16x32xf32>
    %c0_45 = arith.constant 0 : index
    %c0_46 = arith.constant 0 : index
    %133 = vector.load %arg13[%c0_45, %c0_46] : memref<1x32xf32, #tpu.memory_space<vmem>>, vector<1x32xf32>
    %134 = vector.broadcast %133 : vector<1x32xf32> to vector<16x32xf32>
    %135 = arith.addf %132, %134 : vector<16x32xf32>
    %136 = arith.addf %88, %135 : vector<16x32xf32>
    %c0_47 = arith.constant 0 : index
    %c0_48 = arith.constant 0 : index
    %137 = vector.load %arg14[%c0_47, %c0_48] : memref<16x32xf32, #tpu.memory_space<vmem>>, vector<16x32xf32>
    tpu.vector_store %arg14[%c0_47, %c0_48], %136 {strides = array<i32>} : memref<16x32xf32, #tpu.memory_space<vmem>>, vector<16x32xf32>,
    return
  }
  func.func @transform_0(%arg0: i32) -> (i32, i32) {
    %c0_i32 = arith.constant 0 : i32
    %c0_i32_0 = arith.constant 0 : i32
    %c0_i32_1 = arith.constant 0 : i32
    return %c0_i32, %c0_i32_0 : i32, i32
  }
  func.func @transform_1(%arg0: i32) -> (i32, i32) {
    %c0_i32 = arith.constant 0 : i32
    %c0_i32_0 = arith.constant 0 : i32
    %c0_i32_1 = arith.constant 0 : i32
    return %c0_i32, %c0_i32_0 : i32, i32
  }
  func.func @transform_2(%arg0: i32) -> (i32, i32) {
    %c0_i32 = arith.constant 0 : i32
    %c0_i32_0 = arith.constant 0 : i32
    %c0_i32_1 = arith.constant 0 : i32
    return %c0_i32, %c0_i32_0 : i32, i32
  }
  func.func @transform_3(%arg0: i32) -> (i32, i32) {
    %c0_i32 = arith.constant 0 : i32
    %c0_i32_0 = arith.constant 0 : i32
    %c0_i32_1 = arith.constant 0 : i32
    return %c0_i32, %c0_i32_0 : i32, i32
  }
  func.func @transform_4(%arg0: i32) -> (i32, i32) {
    %c0_i32 = arith.constant 0 : i32
    %c0_i32_0 = arith.constant 0 : i32
    %c0_i32_1 = arith.constant 0 : i32
    return %c0_i32, %c0_i32_0 : i32, i32
  }
  func.func @transform_5(%arg0: i32) -> (i32, i32) {
    %c0_i32 = arith.constant 0 : i32
    %c0_i32_0 = arith.constant 0 : i32
    %c0_i32_1 = arith.constant 0 : i32
    return %c0_i32, %c0_i32_0 : i32, i32
  }
  func.func @transform_6(%arg0: i32) -> (i32, i32) {
    %c0_i32 = arith.constant 0 : i32
    %c0_i32_0 = arith.constant 0 : i32
    %c0_i32_1 = arith.constant 0 : i32
    return %c0_i32, %c0_i32_0 : i32, i32
  }
  func.func @transform_7(%arg0: i32) -> (i32, i32) {
    %c0_i32 = arith.constant 0 : i32
    %c0_i32_0 = arith.constant 0 : i32
    %c0_i32_1 = arith.constant 0 : i32
    return %c0_i32, %c0_i32_0 : i32, i32
  }
  func.func @transform_8(%arg0: i32) -> (i32, i32) {
    %c0_i32 = arith.constant 0 : i32
    %c0_i32_0 = arith.constant 0 : i32
    %c0_i32_1 = arith.constant 0 : i32
    return %c0_i32, %c0_i32_0 : i32, i32
  }
  func.func @transform_9(%arg0: i32) -> (i32, i32) {
    %c0_i32 = arith.constant 0 : i32
    %c0_i32_0 = arith.constant 0 : i32
    %c0_i32_1 = arith.constant 0 : i32
    return %c0_i32, %c0_i32_0 : i32, i32
  }
  func.func @transform_10(%arg0: i32) -> (i32, i32) {
    %c0_i32 = arith.constant 0 : i32
    %c0_i32_0 = arith.constant 0 : i32
    %c0_i32_1 = arith.constant 0 : i32
    return %c0_i32, %c0_i32_0 : i32, i32
  }
  func.func @transform_11(%arg0: i32) -> (i32, i32) {
    %c0_i32 = arith.constant 0 : i32
    %c0_i32_0 = arith.constant 0 : i32
    %c0_i32_1 = arith.constant 0 : i32
    return %c0_i32, %c0_i32_0 : i32, i32
  }
  func.func @transform_12(%arg0: i32) -> (i32, i32) {
    %c0_i32 = arith.constant 0 : i32
    %c0_i32_0 = arith.constant 0 : i32
    %c0_i32_1 = arith.constant 0 : i32
    return %c0_i32, %c0_i32_0 : i32, i32
  }
  func.func @transform_13(%arg0: i32) -> (i32, i32) {
    %c0_i32 = arith.constant 0 : i32
    %c0_i32_0 = arith.constant 0 : i32
    %c0_i32_1 = arith.constant 0 : i32
    return %c0_i32, %c0_i32_0 : i32, i32
  }
}

</mosaic_0001>

<llo_original>
// kernel: tpu_custom_call.1
$region0: #{tpu_custom_call.1}
  #allocation0 [shape = 'u32[]', space=smem, size = 0x4, offset = 0x4, fixed_abs, tag = 'smem constant byte address 0x4 - core index']
  #allocation1 [shape = 'u32[144,128]{1,0:T(1,128)}', space=vmem, size = 0x12000, scoped, tag = 'internal scratch']
  %s0 = inlined_call_operand.hbm [shape: f32[16,32], index: 0, kind: input, shape index: {}]
  %s1 = inlined_call_operand.vmem [shape: f32[1,32], index: 1, kind: input, shape index: {}]
  %s2 = inlined_call_operand.vmem [shape: f32[1,32], index: 2, kind: input, shape index: {}]
  %s3 = inlined_call_operand.vmem [shape: f32[32,96], index: 3, kind: input, shape index: {}]
  %s4 = inlined_call_operand.vmem [shape: f32[1,96], index: 4, kind: input, shape index: {}]
  %s5 = inlined_call_operand.vmem [shape: f32[32,32], index: 5, kind: input, shape index: {}]
  %s6 = inlined_call_operand.vmem [shape: f32[1,32], index: 6, kind: input, shape index: {}]
  %s7 = inlined_call_operand.vmem [shape: f32[1,32], index: 7, kind: input, shape index: {}]
  %s8 = inlined_call_operand.vmem [shape: f32[1,32], index: 8, kind: input, shape index: {}]
  %s9 = inlined_call_operand.vmem [shape: f32[32,64], index: 9, kind: input, shape index: {}]
  %s10 = inlined_call_operand.vmem [shape: f32[1,64], index: 10, kind: input, shape index: {}]
  %s11 = inlined_call_operand.vmem [shape: f32[64,32], index: 11, kind: input, shape index: {}]
  %s12 = inlined_call_operand.vmem [shape: f32[1,32], index: 12, kind: input, shape index: {}]
  %s13 = inlined_call_operand.hbm [shape: f32[16,32], index: 13, kind: output, shape index: {}]
  %s14 = sld [smem:[#allocation0]]
  $region66: #{tpu_custom_call.1} parent=0
    _
  %s16 = ssub.s32 1, %s14
  %s17 = scalar_select 0, %s16, %s14
  $region1: #{tpu_custom_call.1} parent=0
    #allocation2 [shape = 'u8[8192]{0}', space=vmem, size = 0x2000, scoped, tag = 'input window, operand 0, single buffered']
    #allocation3 [shape = 's32[1]{0}', space=sflag, size = 0x4, scoped, tag = 'scoped memory for tpu_custom_call.1']
    #allocation4 [shape = 's32[1]{0}', space=sflag, size = 0x4, scoped, tag = 'scoped memory for tpu_custom_call.1']
    #allocation5 [shape = 'u8[8192]{0}', space=vmem, size = 0x2000, scoped, tag = 'output window, operand 0, single buffered']
    %18 = vsyncpa [#allocation3], 0
    %19 = vsyncpa [#allocation4], 0
    // Predicated region
    $region2: #{tpu_custom_call.1} parent=1 // pred_check
      _
    $region3: #{tpu_custom_call.1} parent=1 // pred_check_branch
      %21 = sbr.rel (0) target = $region5
    $region4: #{tpu_custom_call.1} parent=1 // pred_region
      %s23 = ssub.s32 256, 256
      %24 = vsyncadd [#allocation3], %s23
      %s25 = sshll.u32 [#allocation2], 4
      %s26 = int_to_ptr.vmem [resolvable:$true] %s25
      %31 = dma.hbm_to_vmem [thread:$0]  %s0, 256, %s26, [#allocation3], 128, 128, 8
    $region5: #{tpu_custom_call.1} parent=1 // pred_fallthru
      _
    // Predicated region
    $region6: #{tpu_custom_call.1} parent=1 // pred_check
      _
    $region7: #{tpu_custom_call.1} parent=1 // pred_check_branch
      %33 = sbr.rel (0) target = $region9
    $region8: #{tpu_custom_call.1} parent=1 // pred_region
      _
    $region9: #{tpu_custom_call.1} parent=1 // pred_fallthru
      _
    // Predicated region
    $region10: #{tpu_custom_call.1} parent=1 // pred_check
      _
    $region11: #{tpu_custom_call.1} parent=1 // pred_check_branch
      %35 = sbr.rel (0) target = $region13
    $region12: #{tpu_custom_call.1} parent=1 // pred_region
      _
    $region13: #{tpu_custom_call.1} parent=1 // pred_fallthru
      _
    // Predicated region
    $region14: #{tpu_custom_call.1} parent=1 // pred_check
      _
    $region15: #{tpu_custom_call.1} parent=1 // pred_check_branch
      %37 = sbr.rel (0) target = $region17
    $region16: #{tpu_custom_call.1} parent=1 // pred_region
      _
    $region17: #{tpu_custom_call.1} parent=1 // pred_fallthru
      _
    // Predicated region
    $region18: #{tpu_custom_call.1} parent=1 // pred_check
      _
    $region19: #{tpu_custom_call.1} parent=1 // pred_check_branch
      %39 = sbr.rel (0) target = $region21
    $region20: #{tpu_custom_call.1} parent=1 // pred_region
      _
    $region21: #{tpu_custom_call.1} parent=1 // pred_fallthru
      _
    // Predicated region
    $region22: #{tpu_custom_call.1} parent=1 // pred_check
      _
    $region23: #{tpu_custom_call.1} parent=1 // pred_check_branch
      %41 = sbr.rel (0) target = $region25
    $region24: #{tpu_custom_call.1} parent=1 // pred_region
      _
    $region25: #{tpu_custom_call.1} parent=1 // pred_fallthru
      _
    // Predicated region
    $region26: #{tpu_custom_call.1} parent=1 // pred_check
      _
    $region27: #{tpu_custom_call.1} parent=1 // pred_check_branch
      %43 = sbr.rel (0) target = $region29
    $region28: #{tpu_custom_call.1} parent=1 // pred_region
      _
    $region29: #{tpu_custom_call.1} parent=1 // pred_fallthru
      _
    // Predicated region
    $region30: #{tpu_custom_call.1} parent=1 // pred_check
      _
    $region31: #{tpu_custom_call.1} parent=1 // pred_check_branch
      %45 = sbr.rel (0) target = $region33
    $region32: #{tpu_custom_call.1} parent=1 // pred_region
      _
    $region33: #{tpu_custom_call.1} parent=1 // pred_fallthru
      _
    // Predicated region
    $region34: #{tpu_custom_call.1} parent=1 // pred_check
      _
    $region35: #{tpu_custom_call.1} parent=1 // pred_check_branch
      %47 = sbr.rel (0) target = $region37
    $region36: #{tpu_custom_call.1} parent=1 // pred_region
      _
    $region37: #{tpu_custom_call.1} parent=1 // pred_fallthru
      _
    // Predicated region
    $region38: #{tpu_custom_call.1} parent=1 // pred_check
      _
    $region39: #{tpu_custom_call.1} parent=1 // pred_check_branch
      %49 = sbr.rel (0) target = $region41
    $region40: #{tpu_custom_call.1} parent=1 // pred_region
      _
    $region41: #{tpu_custom_call.1} parent=1 // pred_fallthru
      _
    // Predicated region
    $region42: #{tpu_custom_call.1} parent=1 // pred_check
      _
    $region43: #{tpu_custom_call.1} parent=1 // pred_check_branch
      %51 = sbr.rel (0) target = $region45
    $region44: #{tpu_custom_call.1} parent=1 // pred_region
      _
    $region45: #{tpu_custom_call.1} parent=1 // pred_fallthru
      _
    // Predicated region
    $region46: #{tpu_custom_call.1} parent=1 // pred_check
      _
    $region47: #{tpu_custom_call.1} parent=1 // pred_check_branch
      %53 = sbr.rel (0) target = $region49
    $region48: #{tpu_custom_call.1} parent=1 // pred_region
      _
    $region49: #{tpu_custom_call.1} parent=1 // pred_fallthru
      _
    // Predicated region
    $region50: #{tpu_custom_call.1} parent=1 // pred_check
      _
    $region51: #{tpu_custom_call.1} parent=1 // pred_check_branch
      %55 = sbr.rel (0) target = $region53
    $region52: #{tpu_custom_call.1} parent=1 // pred_region
      _
    $region53: #{tpu_custom_call.1} parent=1 // pred_fallthru
      _
    // Predicated region
    $region54: #{tpu_custom_call.1} parent=1 // pred_check
      _
    $region55: #{tpu_custom_call.1} parent=1 // pred_check_branch
      %57 = sbr.rel (0) target = $region57
    $region56: #{tpu_custom_call.1} parent=1 // pred_region
      %58 = dma.done [#allocation3], 256
    $region57: #{tpu_custom_call.1} parent=1 // pred_fallthru
      _
    %v59 = vld [vmem:[#allocation2] sm:$0xff]
    %v60 = vld [vmem:[#allocation2 + $0x8] sm:$0xff]
    %v61 = vlaneseq
    %v62 = vshrl.u32 %v61, 7
    %v63 = vlaneseq
    %v64 = vand.u32 %v63, 127
    %vm65 = vcmp.le.s32.totalorder %v64, %v62
    %v66 = vsel %vm65, 0.0, -1e+30
    %v67 = vld [vmem:[%s1] sm:$0x1]
    %v68 = vld [vmem:[%s2] sm:$0x1]
    %vm69 = vcmask 261120
    %v70 = vsel %vm69, %v59, 0.0
    %71 = vadd.xlane.f32.xlu0 %v70
    %v72 = vpop.xlane.xlu0 %71
    %v73 = vsel %vm69, %v60, 0.0
    %74 = vadd.xlane.f32.xlu0 %v73
    %v75 = vpop.xlane.xlu0 %74
    %v76 = vrcp.pop 32.0
    %v77 = vmul.f32 %v72, %v76
    %v78 = vmul.f32 %v75, %v76
    %v79 = vsub.f32 %v59, %v77
    %v80 = vsub.f32 %v60, %v78
    %v81 = vmul.f32 %v79, %v79
    %v82 = vmul.f32 %v80, %v80
    %v83 = vsel %vm69, %v81, 0.0
    %84 = vadd.xlane.f32.xlu0 %v83
    %v85 = vpop.xlane.xlu0 %84
    %v86 = vsel %vm69, %v82, 0.0
    %87 = vadd.xlane.f32.xlu0 %v86
    %v88 = vpop.xlane.xlu0 %87
    %v89 = vmul.f32 %v85, %v76
    %v90 = vmul.f32 %v88, %v76
    %v91 = vadd.f32 %v89, 1e-12
    %v92 = vadd.f32 %v90, 1e-12
    %v93 = vrsqrt.pop %v91
    %v94 = vrsqrt.pop %v92
    %v95 = vmul.f32 %v79, %v93
    %v96 = vmul.f32 %v80, %v94
    %v98 = vlaneseq
    %v99 = vshrl.u32 %v98, 7
    %v100 = vsub.s32 0, %v99
    %v101 = vrot.slane %v67, %v100
    %v103 = vmul.f32 %v95, %v101
    %v104 = vmul.f32 %v96, %v101
    %v106 = vlaneseq
    %v107 = vshrl.u32 %v106, 7
    %v108 = vsub.s32 0, %v107
    %v109 = vrot.slane %v68, %v108
    %v111 = vadd.f32 %v103, %v109
    %v112 = vadd.f32 %v104, %v109
    %v113 = vld [vmem:[%s3] sm:$0xff]
    %v114 = vld [vmem:[%s3 + $0x8] sm:$0xff]
    %v115 = vld [vmem:[%s3 + $0x10] sm:$0xff]
    %v116 = vld [vmem:[%s3 + $0x18] sm:$0xff]
    %v117 = vld [vmem:[%s4] sm:$0x1]
    %v119 = vlaneseq
    %v120 = vshrl.u32 %v119, 7
    %v121 = vsub.s32 0, %v120
    %v122 = vrot.slane %v117, %v121
    %v125 = vsel %vm69, %v111, 0
    %v128 = vsel %vm69, %v112, 0
    %130 = vmatprep.subr.mxu0 0.0
    %131 = vmatpush1.msra.mxu0 %v113
    %132 = vmatprep.subr.mxu0 0.0
    %133 = vmatpush1.msra.mxu0 %v114
    %134 = vmatprep.subr.mxu0 0.0
    %135 = vmatpush1.msra.mxu0 %v115
    %136 = vmatprep.subr.mxu0 0.0
    %137 = vmatpush1.msra.mxu0 %v116
    %138 = vmatprep.subr.mxu0 0.0
    %139 = vmatpush1.msra.mxu0 0.0
    %140 = vmatprep.subr.mxu0 0.0
    %141 = vmatpush1.msra.mxu0 0.0
    %142 = vmatprep.subr.mxu0 0.0
    %143 = vmatpush1.msra.mxu0 0.0
    %144 = vmatprep.subr.mxu0 0.0
    %145 = vmatpush1.msra.mxu0 0.0
    %146 = vmatprep.subr.mxu0 0.0
    %147 = vmatpush1.msra.mxu0 0.0
    %148 = vmatprep.subr.mxu0 0.0
    %149 = vmatpush1.msra.mxu0 0.0
    %150 = vmatprep.subr.mxu0 0.0
    %151 = vmatpush1.msra.mxu0 0.0
    %152 = vmatprep.subr.mxu0 0.0
    %153 = vmatpush1.msra.mxu0 0.0
    %154 = vmatprep.subr.mxu0 0.0
    %155 = vmatpush1.msra.mxu0 0.0
    %156 = vmatprep.subr.mxu0 0.0
    %157 = vmatpush1.msra.mxu0 0.0
    %158 = vmatprep.subr.mxu0 0.0
    %159 = vmatpush1.msra.mxu0 0.0
    %160 = vmatprep.subr.mxu0 0.0
    %161 = vmatpush1.msra.mxu0 0.0
    %162 = vmatprep.subr.mxu0 0.0
    %163 = vmatpush1.msra.mxu0 0.0
    %164 = vmatprep.subr.mxu0 0.0
    %165 = vmatpush1.msra.mxu0 0.0
    %166 = vmatprep.subr.mxu0 0.0
    %167 = vmatpush1.msra.mxu0 0.0
    %168 = vmatprep.subr.mxu0 0.0
    %169 = vmatpush1.msra.mxu0 0.0
    %170 = vmatprep.subr.mxu0 0.0
    %171 = vmatpush1.msra.mxu0 0.0
    %172 = vmatprep.subr.mxu0 0.0
    %173 = vmatpush1.msra.mxu0 0.0
    %174 = vmatprep.subr.mxu0 0.0
    %175 = vmatpush1.msra.mxu0 0.0
    %176 = vmatprep.subr.mxu0 0.0
    %177 = vmatpush1.msra.mxu0 0.0
    %178 = vmatprep.subr.mxu0 0.0
    %179 = vmatpush1.msra.mxu0 0.0
    %180 = vmatprep.subr.mxu0 0.0
    %181 = vmatpush1.msra.mxu0 0.0
    %182 = vmatprep.subr.mxu0 0.0
    %183 = vmatpush1.msra.mxu0 0.0
    %184 = vmatprep.subr.mxu0 0.0
    %185 = vmatpush1.msra.mxu0 0.0
    %186 = vmatprep.subr.mxu0 0.0
    %187 = vmatpush1.msra.mxu0 0.0
    %188 = vmatprep.subr.mxu0 0.0
    %189 = vmatpush1.msra.mxu0 0.0
    %190 = vmatprep.subr.mxu0 0.0
    %191 = vmatpush1.msra.mxu0 0.0
    %192 = vmatprep.subr.mxu0 0.0
    %193 = vmatpush1.msra.mxu0 0.0
    %194 = vmatprep.mubr.f32.mxu0 0.0
    %195 = vmatmul.mubr.f32.gmra.mrb[0].mxu0 %v125
    %v196 = vpop.f32.mrb[0].mxu0
    %v197 = vadd.f32 %v122, %v196
    %v198 = vpop.f32.mrb[0].mxu0
    %199 = vmatprep.mubr.f32.mxu0 0.0
    %200 = vmatmul.mubr.f32.gmra.mrb[0].mxu0 %v128
    %v201 = vpop.f32.mrb[0].mxu0
    %v202 = vadd.f32 %v122, %v201
    %v203 = vpop.f32.mrb[0].mxu0
    %204 = vdwg.mxu0
    %207 = vrot.lane.b32.xlu0 %v197, 120
    %v208 = vpop.permute.xlu0 %207
    %209 = vrot.lane.b32.xlu0 %v202, 120
    %v210 = vpop.permute.xlu0 %209
    %211 = vrot.lane.b32.xlu0 %v197, 112
    %v212 = vpop.permute.xlu0 %211
    %213 = vrot.lane.b32.xlu0 %v202, 112
    %v214 = vpop.permute.xlu0 %213
    %215 = vrot.lane.b32.xlu0 %v197, 104
    %v216 = vpop.permute.xlu0 %215
    %217 = vrot.lane.b32.xlu0 %v202, 104
    %v218 = vpop.permute.xlu0 %217
    %219 = vrot.lane.b32.xlu0 %v197, 96
    %v220 = vpop.permute.xlu0 %219
    %vm221 = vcmask 64512
    %v222 = vsel %vm221, %v197, 0
    %v224 = vsel %vm221, %v220, 0
    %226 = vmatprep.subr.mxu0 0.0
    %227 = vmatpush1.xpose.msra.mxu0 %v224
    %228 = vmatprep.subr.mxu0 0.0
    %229 = vmatpush1.xpose.msra.mxu0 0.0
    %230 = vmatprep.subr.mxu0 0.0
    %231 = vmatpush1.xpose.msra.mxu0 0.0
    %232 = vmatprep.subr.mxu0 0.0
    %233 = vmatpush1.xpose.msra.mxu0 0.0
    %234 = vmatprep.subr.mxu0 0.0
    %235 = vmatpush1.xpose.msra.mxu0 0.0
    %236 = vmatprep.subr.mxu0 0.0
    %237 = vmatpush1.xpose.msra.mxu0 0.0
    %238 = vmatprep.subr.mxu0 0.0
    %239 = vmatpush1.xpose.msra.mxu0 0.0
    %240 = vmatprep.subr.mxu0 0.0
    %241 = vmatpush1.xpose.msra.mxu0 0.0
    %242 = vmatprep.subr.mxu0 0.0
    %243 = vmatpush1.xpose.msra.mxu0 0.0
    %244 = vmatprep.subr.mxu0 0.0
    %245 = vmatpush1.xpose.msra.mxu0 0.0
    %246 = vmatprep.subr.mxu0 0.0
    %247 = vmatpush1.xpose.msra.mxu0 0.0
    %248 = vmatprep.subr.mxu0 0.0
    %249 = vmatpush1.xpose.msra.mxu0 0.0
    %250 = vmatprep.subr.mxu0 0.0
    %251 = vmatpush1.xpose.msra.mxu0 0.0
    %252 = vmatprep.subr.mxu0 0.0
    %253 = vmatpush1.xpose.msra.mxu0 0.0
    %254 = vmatprep.subr.mxu0 0.0
    %255 = vmatpush1.xpose.msra.mxu0 0.0
    %256 = vmatprep.subr.mxu0 0.0
    %257 = vmatpush1.xpose.msra.mxu0 0.0
    %258 = vmatprep.subr.mxu0 0.0
    %259 = vmatpush1.xpose.msra.mxu0 0.0
    %260 = vmatprep.subr.mxu0 0.0
    %261 = vmatpush1.xpose.msra.mxu0 0.0
    %262 = vmatprep.subr.mxu0 0.0
    %263 = vmatpush1.xpose.msra.mxu0 0.0
    %264 = vmatprep.subr.mxu0 0.0
    %265 = vmatpush1.xpose.msra.mxu0 0.0
    %266 = vmatprep.subr.mxu0 0.0
    %267 = vmatpush1.xpose.msra.mxu0 0.0
    %268 = vmatprep.subr.mxu0 0.0
    %269 = vmatpush1.xpose.msra.mxu0 0.0
    %270 = vmatprep.subr.mxu0 0.0
    %271 = vmatpush1.xpose.msra.mxu0 0.0
    %272 = vmatprep.subr.mxu0 0.0
    %273 = vmatpush1.xpose.msra.mxu0 0.0
    %274 = vmatprep.subr.mxu0 0.0
    %275 = vmatpush1.xpose.msra.mxu0 0.0
    %276 = vmatprep.subr.mxu0 0.0
    %277 = vmatpush1.xpose.msra.mxu0 0.0
    %278 = vmatprep.subr.mxu0 0.0
    %279 = vmatpush1.xpose.msra.mxu0 0.0
    %280 = vmatprep.subr.mxu0 0.0
    %281 = vmatpush1.xpose.msra.mxu0 0.0
    %282 = vmatprep.subr.mxu0 0.0
    %283 = vmatpush1.xpose.msra.mxu0 0.0
    %284 = vmatprep.subr.mxu0 0.0
    %285 = vmatpush1.xpose.msra.mxu0 0.0
    %286 = vmatprep.subr.mxu0 0.0
    %287 = vmatpush1.xpose.msra.mxu0 0.0
    %288 = vmatprep.subr.mxu0 0.0
    %289 = vmatpush1.xpose.msra.mxu0 0.0
    %290 = vmatprep.mubr.f32.mxu0 0.0
    %291 = vmatmul.mubr.f32.gmra.mrb[0].mxu0 %v222
    %v292 = vpop.f32.mrb[0].mxu0
    %v293 = vadd.f32 %v66, %v292
    %v294 = vpop.f32.mrb[0].mxu0
    %295 = vdwg.mxu0
    %296 = vrot.lane.b32.xlu0 %v202, 96
    %v297 = vpop.permute.xlu0 %296
    %v298 = vsel %vm221, %v202, 0
    %v300 = vsel %vm221, %v297, 0
    %302 = vmatprep.subr.mxu0 0.0
    %303 = vmatpush1.xpose.msra.mxu0 %v300
    %304 = vmatprep.subr.mxu0 0.0
    %305 = vmatpush1.xpose.msra.mxu0 0.0
    %306 = vmatprep.subr.mxu0 0.0
    %307 = vmatpush1.xpose.msra.mxu0 0.0
    %308 = vmatprep.subr.mxu0 0.0
    %309 = vmatpush1.xpose.msra.mxu0 0.0
    %310 = vmatprep.subr.mxu0 0.0
    %311 = vmatpush1.xpose.msra.mxu0 0.0
    %312 = vmatprep.subr.mxu0 0.0
    %313 = vmatpush1.xpose.msra.mxu0 0.0
    %314 = vmatprep.subr.mxu0 0.0
    %315 = vmatpush1.xpose.msra.mxu0 0.0
    %316 = vmatprep.subr.mxu0 0.0
    %317 = vmatpush1.xpose.msra.mxu0 0.0
    %318 = vmatprep.subr.mxu0 0.0
    %319 = vmatpush1.xpose.msra.mxu0 0.0
    %320 = vmatprep.subr.mxu0 0.0
    %321 = vmatpush1.xpose.msra.mxu0 0.0
    %322 = vmatprep.subr.mxu0 0.0
    %323 = vmatpush1.xpose.msra.mxu0 0.0
    %324 = vmatprep.subr.mxu0 0.0
    %325 = vmatpush1.xpose.msra.mxu0 0.0
    %326 = vmatprep.subr.mxu0 0.0
    %327 = vmatpush1.xpose.msra.mxu0 0.0
    %328 = vmatprep.subr.mxu0 0.0
    %329 = vmatpush1.xpose.msra.mxu0 0.0
    %330 = vmatprep.subr.mxu0 0.0
    %331 = vmatpush1.xpose.msra.mxu0 0.0
    %332 = vmatprep.subr.mxu0 0.0
    %333 = vmatpush1.xpose.msra.mxu0 0.0
    %334 = vmatprep.subr.mxu0 0.0
    %335 = vmatpush1.xpose.msra.mxu0 0.0
    %336 = vmatprep.subr.mxu0 0.0
    %337 = vmatpush1.xpose.msra.mxu0 0.0
    %338 = vmatprep.subr.mxu0 0.0
    %339 = vmatpush1.xpose.msra.mxu0 0.0
    %340 = vmatprep.subr.mxu0 0.0
    %341 = vmatpush1.xpose.msra.mxu0 0.0
    %342 = vmatprep.subr.mxu0 0.0
    %343 = vmatpush1.xpose.msra.mxu0 0.0
    %344 = vmatprep.subr.mxu0 0.0
    %345 = vmatpush1.xpose.msra.mxu0 0.0
    %346 = vmatprep.subr.mxu0 0.0
    %347 = vmatpush1.xpose.msra.mxu0 0.0
    %348 = vmatprep.subr.mxu0 0.0
    %349 = vmatpush1.xpose.msra.mxu0 0.0
    %350 = vmatprep.subr.mxu0 0.0
    %351 = vmatpush1.xpose.msra.mxu0 0.0
    %352 = vmatprep.subr.mxu0 0.0
    %353 = vmatpush1.xpose.msra.mxu0 0.0
    %354 = vmatprep.subr.mxu0 0.0
    %355 = vmatpush1.xpose.msra.mxu0 0.0
    %356 = vmatprep.subr.mxu0 0.0
    %357 = vmatpush1.xpose.msra.mxu0 0.0
    %358 = vmatprep.subr.mxu0 0.0
    %359 = vmatpush1.xpose.msra.mxu0 0.0
    %360 = vmatprep.subr.mxu0 0.0
    %361 = vmatpush1.xpose.msra.mxu0 0.0
    %362 = vmatprep.subr.mxu0 0.0
    %363 = vmatpush1.xpose.msra.mxu0 0.0
    %364 = vmatprep.subr.mxu0 0.0
    %365 = vmatpush1.xpose.msra.mxu0 0.0
    %366 = vmatprep.mubr.f32.mxu0 0.0
    %367 = vmatmul.mubr.f32.gmra.mrb[0].mxu0 %v298
    %v368 = vpop.f32.mrb[0].mxu0
    %v369 = vadd.f32 %v66, %v368
    %v370 = vpop.f32.mrb[0].mxu0
    %371 = vdwg.mxu0
    %372 = vrot.lane.b32.xlu0 %v208, 96
    %v373 = vpop.permute.xlu0 %372
    %v374 = vsel %vm221, %v208, 0
    %v376 = vsel %vm221, %v373, 0
    %378 = vmatprep.subr.mxu0 0.0
    %379 = vmatpush1.xpose.msra.mxu0 %v376
    %380 = vmatprep.subr.mxu0 0.0
    %381 = vmatpush1.xpose.msra.mxu0 0.0
    %382 = vmatprep.subr.mxu0 0.0
    %383 = vmatpush1.xpose.msra.mxu0 0.0
    %384 = vmatprep.subr.mxu0 0.0
    %385 = vmatpush1.xpose.msra.mxu0 0.0
    %386 = vmatprep.subr.mxu0 0.0
    %387 = vmatpush1.xpose.msra.mxu0 0.0
    %388 = vmatprep.subr.mxu0 0.0
    %389 = vmatpush1.xpose.msra.mxu0 0.0
    %390 = vmatprep.subr.mxu0 0.0
    %391 = vmatpush1.xpose.msra.mxu0 0.0
    %392 = vmatprep.subr.mxu0 0.0
    %393 = vmatpush1.xpose.msra.mxu0 0.0
    %394 = vmatprep.subr.mxu0 0.0
    %395 = vmatpush1.xpose.msra.mxu0 0.0
    %396 = vmatprep.subr.mxu0 0.0
    %397 = vmatpush1.xpose.msra.mxu0 0.0
    %398 = vmatprep.subr.mxu0 0.0
    %399 = vmatpush1.xpose.msra.mxu0 0.0
    %400 = vmatprep.subr.mxu0 0.0
    %401 = vmatpush1.xpose.msra.mxu0 0.0
    %402 = vmatprep.subr.mxu0 0.0
    %403 = vmatpush1.xpose.msra.mxu0 0.0
    %404 = vmatprep.subr.mxu0 0.0
    %405 = vmatpush1.xpose.msra.mxu0 0.0
    %406 = vmatprep.subr.mxu0 0.0
    %407 = vmatpush1.xpose.msra.mxu0 0.0
    %408 = vmatprep.subr.mxu0 0.0
    %409 = vmatpush1.xpose.msra.mxu0 0.0
    %410 = vmatprep.subr.mxu0 0.0
    %411 = vmatpush1.xpose.msra.mxu0 0.0
    %412 = vmatprep.subr.mxu0 0.0
    %413 = vmatpush1.xpose.msra.mxu0 0.0
    %414 = vmatprep.subr.mxu0 0.0
    %415 = vmatpush1.xpose.msra.mxu0 0.0
    %416 = vmatprep.subr.mxu0 0.0
    %417 = vmatpush1.xpose.msra.mxu0 0.0
    %418 = vmatprep.subr.mxu0 0.0
    %419 = vmatpush1.xpose.msra.mxu0 0.0
    %420 = vmatprep.subr.mxu0 0.0
    %421 = vmatpush1.xpose.msra.mxu0 0.0
    %422 = vmatprep.subr.mxu0 0.0
    %423 = vmatpush1.xpose.msra.mxu0 0.0
    %424 = vmatprep.subr.mxu0 0.0
    %425 = vmatpush1.xpose.msra.mxu0 0.0
    %426 = vmatprep.subr.mxu0 0.0
    %427 = vmatpush1.xpose.msra.mxu0 0.0
    %428 = vmatprep.subr.mxu0 0.0
    %429 = vmatpush1.xpose.msra.mxu0 0.0
    %430 = vmatprep.subr.mxu0 0.0
    %431 = vmatpush1.xpose.msra.mxu0 0.0
    %432 = vmatprep.subr.mxu0 0.0
    %433 = vmatpush1.xpose.msra.mxu0 0.0
    %434 = vmatprep.subr.mxu0 0.0
    %435 = vmatpush1.xpose.msra.mxu0 0.0
    %436 = vmatprep.subr.mxu0 0.0
    %437 = vmatpush1.xpose.msra.mxu0 0.0
    %438 = vmatprep.subr.mxu0 0.0
    %439 = vmatpush1.xpose.msra.mxu0 0.0
    %440 = vmatprep.subr.mxu0 0.0
    %441 = vmatpush1.xpose.msra.mxu0 0.0
    %442 = vmatprep.mubr.f32.mxu0 0.0
    %443 = vmatmul.mubr.f32.gmra.mrb[0].mxu0 %v374
    %v444 = vpop.f32.mrb[0].mxu0
    %v445 = vadd.f32 %v66, %v444
    %v446 = vpop.f32.mrb[0].mxu0
    %447 = vdwg.mxu0
    %448 = vrot.lane.b32.xlu0 %v210, 96
    %v449 = vpop.permute.xlu0 %448
    %v450 = vsel %vm221, %v210, 0
    %v452 = vsel %vm221, %v449, 0
    %454 = vmatprep.subr.mxu0 0.0
    %455 = vmatpush1.xpose.msra.mxu0 %v452
    %456 = vmatprep.subr.mxu0 0.0
    %457 = vmatpush1.xpose.msra.mxu0 0.0
    %458 = vmatprep.subr.mxu0 0.0
    %459 = vmatpush1.xpose.msra.mxu0 0.0
    %460 = vmatprep.subr.mxu0 0.0
    %461 = vmatpush1.xpose.msra.mxu0 0.0
    %462 = vmatprep.subr.mxu0 0.0
    %463 = vmatpush1.xpose.msra.mxu0 0.0
    %464 = vmatprep.subr.mxu0 0.0
    %465 = vmatpush1.xpose.msra.mxu0 0.0
    %466 = vmatprep.subr.mxu0 0.0
    %467 = vmatpush1.xpose.msra.mxu0 0.0
    %468 = vmatprep.subr.mxu0 0.0
    %469 = vmatpush1.xpose.msra.mxu0 0.0
    %470 = vmatprep.subr.mxu0 0.0
    %471 = vmatpush1.xpose.msra.mxu0 0.0
    %472 = vmatprep.subr.mxu0 0.0
    %473 = vmatpush1.xpose.msra.mxu0 0.0
    %474 = vmatprep.subr.mxu0 0.0
    %475 = vmatpush1.xpose.msra.mxu0 0.0
    %476 = vmatprep.subr.mxu0 0.0
    %477 = vmatpush1.xpose.msra.mxu0 0.0
    %478 = vmatprep.subr.mxu0 0.0
    %479 = vmatpush1.xpose.msra.mxu0 0.0
    %480 = vmatprep.subr.mxu0 0.0
    %481 = vmatpush1.xpose.msra.mxu0 0.0
    %482 = vmatprep.subr.mxu0 0.0
    %483 = vmatpush1.xpose.msra.mxu0 0.0
    %484 = vmatprep.subr.mxu0 0.0
    %485 = vmatpush1.xpose.msra.mxu0 0.0
    %486 = vmatprep.subr.mxu0 0.0
    %487 = vmatpush1.xpose.msra.mxu0 0.0
    %488 = vmatprep.subr.mxu0 0.0
    %489 = vmatpush1.xpose.msra.mxu0 0.0
    %490 = vmatprep.subr.mxu0 0.0
    %491 = vmatpush1.xpose.msra.mxu0 0.0
    %492 = vmatprep.subr.mxu0 0.0
    %493 = vmatpush1.xpose.msra.mxu0 0.0
    %494 = vmatprep.subr.mxu0 0.0
    %495 = vmatpush1.xpose.msra.mxu0 0.0
    %496 = vmatprep.subr.mxu0 0.0
    %497 = vmatpush1.xpose.msra.mxu0 0.0
    %498 = vmatprep.subr.mxu0 0.0
    %499 = vmatpush1.xpose.msra.mxu0 0.0
    %500 = vmatprep.subr.mxu0 0.0
    %501 = vmatpush1.xpose.msra.mxu0 0.0
    %502 = vmatprep.subr.mxu0 0.0
    %503 = vmatpush1.xpose.msra.mxu0 0.0
    %504 = vmatprep.subr.mxu0 0.0
    %505 = vmatpush1.xpose.msra.mxu0 0.0
    %506 = vmatprep.subr.mxu0 0.0
    %507 = vmatpush1.xpose.msra.mxu0 0.0
    %508 = vmatprep.subr.mxu0 0.0
    %509 = vmatpush1.xpose.msra.mxu0 0.0
    %510 = vmatprep.subr.mxu0 0.0
    %511 = vmatpush1.xpose.msra.mxu0 0.0
    %512 = vmatprep.subr.mxu0 0.0
    %513 = vmatpush1.xpose.msra.mxu0 0.0
    %514 = vmatprep.subr.mxu0 0.0
    %515 = vmatpush1.xpose.msra.mxu0 0.0
    %516 = vmatprep.subr.mxu0 0.0
    %517 = vmatpush1.xpose.msra.mxu0 0.0
    %518 = vmatprep.mubr.f32.mxu0 0.0
    %519 = vmatmul.mubr.f32.gmra.mrb[0].mxu0 %v450
    %v520 = vpop.f32.mrb[0].mxu0
    %v521 = vadd.f32 %v66, %v520
    %v522 = vpop.f32.mrb[0].mxu0
    %523 = vdwg.mxu0
    %524 = vrot.lane.b32.xlu0 %v212, 96
    %v525 = vpop.permute.xlu0 %524
    %v526 = vsel %vm221, %v212, 0
    %v528 = vsel %vm221, %v525, 0
    %530 = vmatprep.subr.mxu0 0.0
    %531 = vmatpush1.xpose.msra.mxu0 %v528
    %532 = vmatprep.subr.mxu0 0.0
    %533 = vmatpush1.xpose.msra.mxu0 0.0
    %534 = vmatprep.subr.mxu0 0.0
    %535 = vmatpush1.xpose.msra.mxu0 0.0
    %536 = vmatprep.subr.mxu0 0.0
    %537 = vmatpush1.xpose.msra.mxu0 0.0
    %538 = vmatprep.subr.mxu0 0.0
    %539 = vmatpush1.xpose.msra.mxu0 0.0
    %540 = vmatprep.subr.mxu0 0.0
    %541 = vmatpush1.xpose.msra.mxu0 0.0
    %542 = vmatprep.subr.mxu0 0.0
    %543 = vmatpush1.xpose.msra.mxu0 0.0
    %544 = vmatprep.subr.mxu0 0.0
    %545 = vmatpush1.xpose.msra.mxu0 0.0
    %546 = vmatprep.subr.mxu0 0.0
    %547 = vmatpush1.xpose.msra.mxu0 0.0
    %548 = vmatprep.subr.mxu0 0.0
    %549 = vmatpush1.xpose.msra.mxu0 0.0
    %550 = vmatprep.subr.mxu0 0.0
    %551 = vmatpush1.xpose.msra.mxu0 0.0
    %552 = vmatprep.subr.mxu0 0.0
    %553 = vmatpush1.xpose.msra.mxu0 0.0
    %554 = vmatprep.subr.mxu0 0.0
    %555 = vmatpush1.xpose.msra.mxu0 0.0
    %556 = vmatprep.subr.mxu0 0.0
    %557 = vmatpush1.xpose.msra.mxu0 0.0
    %558 = vmatprep.subr.mxu0 0.0
    %559 = vmatpush1.xpose.msra.mxu0 0.0
    %560 = vmatprep.subr.mxu0 0.0
    %561 = vmatpush1.xpose.msra.mxu0 0.0
    %562 = vmatprep.subr.mxu0 0.0
    %563 = vmatpush1.xpose.msra.mxu0 0.0
    %564 = vmatprep.subr.mxu0 0.0
    %565 = vmatpush1.xpose.msra.mxu0 0.0
    %566 = vmatprep.subr.mxu0 0.0
    %567 = vmatpush1.xpose.msra.mxu0 0.0
    %568 = vmatprep.subr.mxu0 0.0
    %569 = vmatpush1.xpose.msra.mxu0 0.0
    %570 = vmatprep.subr.mxu0 0.0
    %571 = vmatpush1.xpose.msra.mxu0 0.0
    %572 = vmatprep.subr.mxu0 0.0
    %573 = vmatpush1.xpose.msra.mxu0 0.0
    %574 = vmatprep.subr.mxu0 0.0
    %575 = vmatpush1.xpose.msra.mxu0 0.0
    %576 = vmatprep.subr.mxu0 0.0
    %577 = vmatpush1.xpose.msra.mxu0 0.0
    %578 = vmatprep.subr.mxu0 0.0
    %579 = vmatpush1.xpose.msra.mxu0 0.0
    %580 = vmatprep.subr.mxu0 0.0
    %581 = vmatpush1.xpose.msra.mxu0 0.0
    %582 = vmatprep.subr.mxu0 0.0
    %583 = vmatpush1.xpose.msra.mxu0 0.0
    %584 = vmatprep.subr.mxu0 0.0
    %585 = vmatpush1.xpose.msra.mxu0 0.0
    %586 = vmatprep.subr.mxu0 0.0
    %587 = vmatpush1.xpose.msra.mxu0 0.0
    %588 = vmatprep.subr.mxu0 0.0
    %589 = vmatpush1.xpose.msra.mxu0 0.0
    %590 = vmatprep.subr.mxu0 0.0
    %591 = vmatpush1.xpose.msra.mxu0 0.0
    %592 = vmatprep.subr.mxu0 0.0
    %593 = vmatpush1.xpose.msra.mxu0 0.0
    %594 = vmatprep.mubr.f32.mxu0 0.0
    %595 = vmatmul.mubr.f32.gmra.mrb[0].mxu0 %v526
    %v596 = vpop.f32.mrb[0].mxu0
    %v597 = vadd.f32 %v66, %v596
    %v598 = vpop.f32.mrb[0].mxu0
    %599 = vdwg.mxu0
    %600 = vrot.lane.b32.xlu0 %v214, 96
    %v601 = vpop.permute.xlu0 %600
    %v602 = vsel %vm221, %v214, 0
    %v604 = vsel %vm221, %v601, 0
    %606 = vmatprep.subr.mxu0 0.0
    %607 = vmatpush1.xpose.msra.mxu0 %v604
    %608 = vmatprep.subr.mxu0 0.0
    %609 = vmatpush1.xpose.msra.mxu0 0.0
    %610 = vmatprep.subr.mxu0 0.0
    %611 = vmatpush1.xpose.msra.mxu0 0.0
    %612 = vmatprep.subr.mxu0 0.0
    %613 = vmatpush1.xpose.msra.mxu0 0.0
    %614 = vmatprep.subr.mxu0 0.0
    %615 = vmatpush1.xpose.msra.mxu0 0.0
    %616 = vmatprep.subr.mxu0 0.0
    %617 = vmatpush1.xpose.msra.mxu0 0.0
    %618 = vmatprep.subr.mxu0 0.0
    %619 = vmatpush1.xpose.msra.mxu0 0.0
    %620 = vmatprep.subr.mxu0 0.0
    %621 = vmatpush1.xpose.msra.mxu0 0.0
    %622 = vmatprep.subr.mxu0 0.0
    %623 = vmatpush1.xpose.msra.mxu0 0.0
    %624 = vmatprep.subr.mxu0 0.0
    %625 = vmatpush1.xpose.msra.mxu0 0.0
    %626 = vmatprep.subr.mxu0 0.0
    %627 = vmatpush1.xpose.msra.mxu0 0.0
    %628 = vmatprep.subr.mxu0 0.0
    %629 = vmatpush1.xpose.msra.mxu0 0.0
    %630 = vmatprep.subr.mxu0 0.0
    %631 = vmatpush1.xpose.msra.mxu0 0.0
    %632 = vmatprep.subr.mxu0 0.0
    %633 = vmatpush1.xpose.msra.mxu0 0.0
    %634 = vmatprep.subr.mxu0 0.0
    %635 = vmatpush1.xpose.msra.mxu0 0.0
    %636 = vmatprep.subr.mxu0 0.0
    %637 = vmatpush1.xpose.msra.mxu0 0.0
    %638 = vmatprep.subr.mxu0 0.0
    %639 = vmatpush1.xpose.msra.mxu0 0.0
    %640 = vmatprep.subr.mxu0 0.0
    %641 = vmatpush1.xpose.msra.mxu0 0.0
    %642 = vmatprep.subr.mxu0 0.0
    %643 = vmatpush1.xpose.msra.mxu0 0.0
    %644 = vmatprep.subr.mxu0 0.0
    %645 = vmatpush1.xpose.msra.mxu0 0.0
    %646 = vmatprep.subr.mxu0 0.0
    %647 = vmatpush1.xpose.msra.mxu0 0.0
    %648 = vmatprep.subr.mxu0 0.0
    %649 = vmatpush1.xpose.msra.mxu0 0.0
    %650 = vmatprep.subr.mxu0 0.0
    %651 = vmatpush1.xpose.msra.mxu0 0.0
    %652 = vmatprep.subr.mxu0 0.0
    %653 = vmatpush1.xpose.msra.mxu0 0.0
    %654 = vmatprep.subr.mxu0 0.0
    %655 = vmatpush1.xpose.msra.mxu0 0.0
    %656 = vmatprep.subr.mxu0 0.0
    %657 = vmatpush1.xpose.msra.mxu0 0.0
    %658 = vmatprep.subr.mxu0 0.0
    %659 = vmatpush1.xpose.msra.mxu0 0.0
    %660 = vmatprep.subr.mxu0 0.0
    %661 = vmatpush1.xpose.msra.mxu0 0.0
    %662 = vmatprep.subr.mxu0 0.0
    %663 = vmatpush1.xpose.msra.mxu0 0.0
    %664 = vmatprep.subr.mxu0 0.0
    %665 = vmatpush1.xpose.msra.mxu0 0.0
    %666 = vmatprep.subr.mxu0 0.0
    %667 = vmatpush1.xpose.msra.mxu0 0.0
    %668 = vmatprep.subr.mxu0 0.0
    %669 = vmatpush1.xpose.msra.mxu0 0.0
    %670 = vmatprep.mubr.f32.mxu0 0.0
    %671 = vmatmul.mubr.f32.gmra.mrb[0].mxu0 %v602
    %v672 = vpop.f32.mrb[0].mxu0
    %v673 = vadd.f32 %v66, %v672
    %v674 = vpop.f32.mrb[0].mxu0
    %675 = vdwg.mxu0
    %676 = vrot.lane.b32.xlu0 %v216, 96
    %v677 = vpop.permute.xlu0 %676
    %v678 = vsel %vm221, %v216, 0
    %v680 = vsel %vm221, %v677, 0
    %682 = vmatprep.subr.mxu0 0.0
    %683 = vmatpush1.xpose.msra.mxu0 %v680
    %684 = vmatprep.subr.mxu0 0.0
    %685 = vmatpush1.xpose.msra.mxu0 0.0
    %686 = vmatprep.subr.mxu0 0.0
    %687 = vmatpush1.xpose.msra.mxu0 0.0
    %688 = vmatprep.subr.mxu0 0.0
    %689 = vmatpush1.xpose.msra.mxu0 0.0
    %690 = vmatprep.subr.mxu0 0.0
    %691 = vmatpush1.xpose.msra.mxu0 0.0
    %692 = vmatprep.subr.mxu0 0.0
    %693 = vmatpush1.xpose.msra.mxu0 0.0
    %694 = vmatprep.subr.mxu0 0.0
    %695 = vmatpush1.xpose.msra.mxu0 0.0
    %696 = vmatprep.subr.mxu0 0.0
    %697 = vmatpush1.xpose.msra.mxu0 0.0
    %698 = vmatprep.subr.mxu0 0.0
    %699 = vmatpush1.xpose.msra.mxu0 0.0
    %700 = vmatprep.subr.mxu0 0.0
    %701 = vmatpush1.xpose.msra.mxu0 0.0
    %702 = vmatprep.subr.mxu0 0.0
    %703 = vmatpush1.xpose.msra.mxu0 0.0
    %704 = vmatprep.subr.mxu0 0.0
    %705 = vmatpush1.xpose.msra.mxu0 0.0
    %706 = vmatprep.subr.mxu0 0.0
    %707 = vmatpush1.xpose.msra.mxu0 0.0
    %708 = vmatprep.subr.mxu0 0.0
    %709 = vmatpush1.xpose.msra.mxu0 0.0
    %710 = vmatprep.subr.mxu0 0.0
    %711 = vmatpush1.xpose.msra.mxu0 0.0
    %712 = vmatprep.subr.mxu0 0.0
    %713 = vmatpush1.xpose.msra.mxu0 0.0
    %714 = vmatprep.subr.mxu0 0.0
    %715 = vmatpush1.xpose.msra.mxu0 0.0
    %716 = vmatprep.subr.mxu0 0.0
    %717 = vmatpush1.xpose.msra.mxu0 0.0
    %718 = vmatprep.subr.mxu0 0.0
    %719 = vmatpush1.xpose.msra.mxu0 0.0
    %720 = vmatprep.subr.mxu0 0.0
    %721 = vmatpush1.xpose.msra.mxu0 0.0
    %722 = vmatprep.subr.mxu0 0.0
    %723 = vmatpush1.xpose.msra.mxu0 0.0
    %724 = vmatprep.subr.mxu0 0.0
    %725 = vmatpush1.xpose.msra.mxu0 0.0
    %726 = vmatprep.subr.mxu0 0.0
    %727 = vmatpush1.xpose.msra.mxu0 0.0
    %728 = vmatprep.subr.mxu0 0.0
    %729 = vmatpush1.xpose.msra.mxu0 0.0
    %730 = vmatprep.subr.mxu0 0.0
    %731 = vmatpush1.xpose.msra.mxu0 0.0
    %732 = vmatprep.subr.mxu0 0.0
    %733 = vmatpush1.xpose.msra.mxu0 0.0
    %734 = vmatprep.subr.mxu0 0.0
    %735 = vmatpush1.xpose.msra.mxu0 0.0
    %736 = vmatprep.subr.mxu0 0.0
    %737 = vmatpush1.xpose.msra.mxu0 0.0
    %738 = vmatprep.subr.mxu0 0.0
    %739 = vmatpush1.xpose.msra.mxu0 0.0
    %740 = vmatprep.subr.mxu0 0.0
    %741 = vmatpush1.xpose.msra.mxu0 0.0
    %742 = vmatprep.subr.mxu0 0.0
    %743 = vmatpush1.xpose.msra.mxu0 0.0
    %744 = vmatprep.subr.mxu0 0.0
    %745 = vmatpush1.xpose.msra.mxu0 0.0
    %746 = vmatprep.mubr.f32.mxu0 0.0
    %747 = vmatmul.mubr.f32.gmra.mrb[0].mxu0 %v678
    %v748 = vpop.f32.mrb[0].mxu0
    %v749 = vadd.f32 %v66, %v748
    %v750 = vpop.f32.mrb[0].mxu0
    %751 = vdwg.mxu0
    %752 = vrot.lane.b32.xlu0 %v218, 96
    %v753 = vpop.permute.xlu0 %752
    %v754 = vsel %vm221, %v218, 0
    %v756 = vsel %vm221, %v753, 0
    %758 = vmatprep.subr.mxu0 0.0
    %759 = vmatpush1.xpose.msra.mxu0 %v756
    %760 = vmatprep.subr.mxu0 0.0
    %761 = vmatpush1.xpose.msra.mxu0 0.0
    %762 = vmatprep.subr.mxu0 0.0
    %763 = vmatpush1.xpose.msra.mxu0 0.0
    %764 = vmatprep.subr.mxu0 0.0
    %765 = vmatpush1.xpose.msra.mxu0 0.0
    %766 = vmatprep.subr.mxu0 0.0
    %767 = vmatpush1.xpose.msra.mxu0 0.0
    %768 = vmatprep.subr.mxu0 0.0
    %769 = vmatpush1.xpose.msra.mxu0 0.0
    %770 = vmatprep.subr.mxu0 0.0
    %771 = vmatpush1.xpose.msra.mxu0 0.0
    %772 = vmatprep.subr.mxu0 0.0
    %773 = vmatpush1.xpose.msra.mxu0 0.0
    %774 = vmatprep.subr.mxu0 0.0
    %775 = vmatpush1.xpose.msra.mxu0 0.0
    %776 = vmatprep.subr.mxu0 0.0
    %777 = vmatpush1.xpose.msra.mxu0 0.0
    %778 = vmatprep.subr.mxu0 0.0
    %779 = vmatpush1.xpose.msra.mxu0 0.0
    %780 = vmatprep.subr.mxu0 0.0
    %781 = vmatpush1.xpose.msra.mxu0 0.0
    %782 = vmatprep.subr.mxu0 0.0
    %783 = vmatpush1.xpose.msra.mxu0 0.0
    %784 = vmatprep.subr.mxu0 0.0
    %785 = vmatpush1.xpose.msra.mxu0 0.0
    %786 = vmatprep.subr.mxu0 0.0
    %787 = vmatpush1.xpose.msra.mxu0 0.0
    %788 = vmatprep.subr.mxu0 0.0
    %789 = vmatpush1.xpose.msra.mxu0 0.0
    %790 = vmatprep.subr.mxu0 0.0
    %791 = vmatpush1.xpose.msra.mxu0 0.0
    %792 = vmatprep.subr.mxu0 0.0
    %793 = vmatpush1.xpose.msra.mxu0 0.0
    %794 = vmatprep.subr.mxu0 0.0
    %795 = vmatpush1.xpose.msra.mxu0 0.0
    %796 = vmatprep.subr.mxu0 0.0
    %797 = vmatpush1.xpose.msra.mxu0 0.0
    %798 = vmatprep.subr.mxu0 0.0
    %799 = vmatpush1.xpose.msra.mxu0 0.0
    %800 = vmatprep.subr.mxu0 0.0
    %801 = vmatpush1.xpose.msra.mxu0 0.0
    %802 = vmatprep.subr.mxu0 0.0
    %803 = vmatpush1.xpose.msra.mxu0 0.0
    %804 = vmatprep.subr.mxu0 0.0
    %805 = vmatpush1.xpose.msra.mxu0 0.0
    %806 = vmatprep.subr.mxu0 0.0
    %807 = vmatpush1.xpose.msra.mxu0 0.0
    %808 = vmatprep.subr.mxu0 0.0
    %809 = vmatpush1.xpose.msra.mxu0 0.0
    %810 = vmatprep.subr.mxu0 0.0
    %811 = vmatpush1.xpose.msra.mxu0 0.0
    %812 = vmatprep.subr.mxu0 0.0
    %813 = vmatpush1.xpose.msra.mxu0 0.0
    %814 = vmatprep.subr.mxu0 0.0
    %815 = vmatpush1.xpose.msra.mxu0 0.0
    %816 = vmatprep.subr.mxu0 0.0
    %817 = vmatpush1.xpose.msra.mxu0 0.0
    %818 = vmatprep.subr.mxu0 0.0
    %819 = vmatpush1.xpose.msra.mxu0 0.0
    %820 = vmatprep.subr.mxu0 0.0
    %821 = vmatpush1.xpose.msra.mxu0 0.0
    %822 = vmatprep.mubr.f32.mxu0 0.0
    %823 = vmatmul.mubr.f32.gmra.mrb[0].mxu0 %v754
    %v824 = vpop.f32.mrb[0].mxu0
    %v825 = vadd.f32 %v66, %v824
    %v826 = vpop.f32.mrb[0].mxu0
    %827 = vdwg.mxu0
    %v828 = vmul.f32 %v293, 1.442695
    %v829 = vpow.pop %v828
    %v830 = vmul.f32 %v369, 1.442695
    %v831 = vpow.pop %v830
    %v832 = vmul.f32 %v445, 1.442695
    %v833 = vpow.pop %v832
    %v834 = vmul.f32 %v521, 1.442695
    %v835 = vpow.pop %v834
    %v836 = vmul.f32 %v597, 1.442695
    %v837 = vpow.pop %v836
    %v838 = vmul.f32 %v673, 1.442695
    %v839 = vpow.pop %v838
    %v840 = vmul.f32 %v749, 1.442695
    %v841 = vpow.pop %v840
    %v842 = vmul.f32 %v825, 1.442695
    %v843 = vpow.pop %v842
    %v844 = vsel %vm221, %v829, 0.0
    %845 = vadd.xlane.f32.xlu0 %v844
    %v846 = vpop.xlane.xlu0 %845
    %v847 = vsel %vm221, %v831, 0.0
    %848 = vadd.xlane.f32.xlu0 %v847
    %v849 = vpop.xlane.xlu0 %848
    %v850 = vsel %vm221, %v833, 0.0
    %851 = vadd.xlane.f32.xlu0 %v850
    %v852 = vpop.xlane.xlu0 %851
    %v853 = vsel %vm221, %v835, 0.0
    %854 = vadd.xlane.f32.xlu0 %v853
    %v855 = vpop.xlane.xlu0 %854
    %v856 = vsel %vm221, %v837, 0.0
    %857 = vadd.xlane.f32.xlu0 %v856
    %v858 = vpop.xlane.xlu0 %857
    %v859 = vsel %vm221, %v839, 0.0
    %860 = vadd.xlane.f32.xlu0 %v859
    %v861 = vpop.xlane.xlu0 %860
    %v862 = vsel %vm221, %v841, 0.0
    %863 = vadd.xlane.f32.xlu0 %v862
    %v864 = vpop.xlane.xlu0 %863
    %v865 = vsel %vm221, %v843, 0.0
    %866 = vadd.xlane.f32.xlu0 %v865
    %v867 = vpop.xlane.xlu0 %866
    %v868 = vrcp.pop %v846
    %v869 = vrcp.pop %v849
    %v870 = vrcp.pop %v852
    %v871 = vrcp.pop %v855
    %v872 = vrcp.pop %v858
    %v873 = vrcp.pop %v861
    %v874 = vrcp.pop %v864
    %v875 = vrcp.pop %v867
    %v876 = vmul.f32 %v829, %v868
    %v877 = vmul.f32 %v831, %v869
    %v878 = vmul.f32 %v833, %v870
    %v879 = vmul.f32 %v835, %v871
    %v880 = vmul.f32 %v837, %v872
    %v881 = vmul.f32 %v839, %v873
    %v882 = vmul.f32 %v841, %v874
    %v883 = vmul.f32 %v843, %v875
    %884 = vrot.lane.b32.xlu0 %v197, 64
    %v885 = vpop.permute.xlu0 %884
    %v888 = vsel %vm221, %v876, 0
    %890 = vmatprep.subr.mxu0 0.0
    %891 = vmatpush1.msra.mxu0 %v885
    %892 = vmatprep.subr.mxu0 0.0
    %893 = vmatpush1.msra.mxu0 0.0
    %894 = vmatprep.subr.mxu0 0.0
    %895 = vmatpush1.msra.mxu0 0.0
    %896 = vmatprep.subr.mxu0 0.0
    %897 = vmatpush1.msra.mxu0 0.0
    %898 = vmatprep.subr.mxu0 0.0
    %899 = vmatpush1.msra.mxu0 0.0
    %900 = vmatprep.subr.mxu0 0.0
    %901 = vmatpush1.msra.mxu0 0.0
    %902 = vmatprep.subr.mxu0 0.0
    %903 = vmatpush1.msra.mxu0 0.0
    %904 = vmatprep.subr.mxu0 0.0
    %905 = vmatpush1.msra.mxu0 0.0
    %906 = vmatprep.subr.mxu0 0.0
    %907 = vmatpush1.msra.mxu0 0.0
    %908 = vmatprep.subr.mxu0 0.0
    %909 = vmatpush1.msra.mxu0 0.0
    %910 = vmatprep.subr.mxu0 0.0
    %911 = vmatpush1.msra.mxu0 0.0
    %912 = vmatprep.subr.mxu0 0.0
    %913 = vmatpush1.msra.mxu0 0.0
    %914 = vmatprep.subr.mxu0 0.0
    %915 = vmatpush1.msra.mxu0 0.0
    %916 = vmatprep.subr.mxu0 0.0
    %917 = vmatpush1.msra.mxu0 0.0
    %918 = vmatprep.subr.mxu0 0.0
    %919 = vmatpush1.msra.mxu0 0.0
    %920 = vmatprep.subr.mxu0 0.0
    %921 = vmatpush1.msra.mxu0 0.0
    %922 = vmatprep.subr.mxu0 0.0
    %923 = vmatpush1.msra.mxu0 0.0
    %924 = vmatprep.subr.mxu0 0.0
    %925 = vmatpush1.msra.mxu0 0.0
    %926 = vmatprep.subr.mxu0 0.0
    %927 = vmatpush1.msra.mxu0 0.0
    %928 = vmatprep.subr.mxu0 0.0
    %929 = vmatpush1.msra.mxu0 0.0
    %930 = vmatprep.subr.mxu0 0.0
    %931 = vmatpush1.msra.mxu0 0.0
    %932 = vmatprep.subr.mxu0 0.0
    %933 = vmatpush1.msra.mxu0 0.0
    %934 = vmatprep.subr.mxu0 0.0
    %935 = vmatpush1.msra.mxu0 0.0
    %936 = vmatprep.subr.mxu0 0.0
    %937 = vmatpush1.msra.mxu0 0.0
    %938 = vmatprep.subr.mxu0 0.0
    %939 = vmatpush1.msra.mxu0 0.0
    %940 = vmatprep.subr.mxu0 0.0
    %941 = vmatpush1.msra.mxu0 0.0
    %942 = vmatprep.subr.mxu0 0.0
    %943 = vmatpush1.msra.mxu0 0.0
    %944 = vmatprep.subr.mxu0 0.0
    %945 = vmatpush1.msra.mxu0 0.0
    %946 = vmatprep.subr.mxu0 0.0
    %947 = vmatpush1.msra.mxu0 0.0
    %948 = vmatprep.subr.mxu0 0.0
    %949 = vmatpush1.msra.mxu0 0.0
    %950 = vmatprep.subr.mxu0 0.0
    %951 = vmatpush1.msra.mxu0 0.0
    %952 = vmatprep.subr.mxu0 0.0
    %953 = vmatpush1.msra.mxu0 0.0
    %954 = vmatprep.mubr.f32.mxu0 0.0
    %955 = vmatmul.mubr.f32.gmra.mrb[0].mxu0 %v888
    %v956 = vpop.f32.mrb[0].mxu0
    %v957 = vadd.f32 0.0, %v956
    %v958 = vpop.f32.mrb[0].mxu0
    %959 = vdwg.mxu0
    %960 = vrot.lane.b32.xlu0 %v202, 64
    %v961 = vpop.permute.xlu0 %960
    %v964 = vsel %vm221, %v877, 0
    %966 = vmatprep.subr.mxu0 0.0
    %967 = vmatpush1.msra.mxu0 %v961
    %968 = vmatprep.subr.mxu0 0.0
    %969 = vmatpush1.msra.mxu0 0.0
    %970 = vmatprep.subr.mxu0 0.0
    %971 = vmatpush1.msra.mxu0 0.0
    %972 = vmatprep.subr.mxu0 0.0
    %973 = vmatpush1.msra.mxu0 0.0
    %974 = vmatprep.subr.mxu0 0.0
    %975 = vmatpush1.msra.mxu0 0.0
    %976 = vmatprep.subr.mxu0 0.0
    %977 = vmatpush1.msra.mxu0 0.0
    %978 = vmatprep.subr.mxu0 0.0
    %979 = vmatpush1.msra.mxu0 0.0
    %980 = vmatprep.subr.mxu0 0.0
    %981 = vmatpush1.msra.mxu0 0.0
    %982 = vmatprep.subr.mxu0 0.0
    %983 = vmatpush1.msra.mxu0 0.0
    %984 = vmatprep.subr.mxu0 0.0
    %985 = vmatpush1.msra.mxu0 0.0
    %986 = vmatprep.subr.mxu0 0.0
    %987 = vmatpush1.msra.mxu0 0.0
    %988 = vmatprep.subr.mxu0 0.0
    %989 = vmatpush1.msra.mxu0 0.0
    %990 = vmatprep.subr.mxu0 0.0
    %991 = vmatpush1.msra.mxu0 0.0
    %992 = vmatprep.subr.mxu0 0.0
    %993 = vmatpush1.msra.mxu0 0.0
    %994 = vmatprep.subr.mxu0 0.0
    %995 = vmatpush1.msra.mxu0 0.0
    %996 = vmatprep.subr.mxu0 0.0
    %997 = vmatpush1.msra.mxu0 0.0
    %998 = vmatprep.subr.mxu0 0.0
    %999 = vmatpush1.msra.mxu0 0.0
    %1000 = vmatprep.subr.mxu0 0.0
    %1001 = vmatpush1.msra.mxu0 0.0
    %1002 = vmatprep.subr.mxu0 0.0
    %1003 = vmatpush1.msra.mxu0 0.0
    %1004 = vmatprep.subr.mxu0 0.0
    %1005 = vmatpush1.msra.mxu0 0.0
    %1006 = vmatprep.subr.mxu0 0.0
    %1007 = vmatpush1.msra.mxu0 0.0
    %1008 = vmatprep.subr.mxu0 0.0
    %1009 = vmatpush1.msra.mxu0 0.0
    %1010 = vmatprep.subr.mxu0 0.0
    %1011 = vmatpush1.msra.mxu0 0.0
    %1012 = vmatprep.subr.mxu0 0.0
    %1013 = vmatpush1.msra.mxu0 0.0
    %1014 = vmatprep.subr.mxu0 0.0
    %1015 = vmatpush1.msra.mxu0 0.0
    %1016 = vmatprep.subr.mxu0 0.0
    %1017 = vmatpush1.msra.mxu0 0.0
    %1018 = vmatprep.subr.mxu0 0.0
    %1019 = vmatpush1.msra.mxu0 0.0
    %1020 = vmatprep.subr.mxu0 0.0
    %1021 = vmatpush1.msra.mxu0 0.0
    %1022 = vmatprep.subr.mxu0 0.0
    %1023 = vmatpush1.msra.mxu0 0.0
    %1024 = vmatprep.subr.mxu0 0.0
    %1025 = vmatpush1.msra.mxu0 0.0
    %1026 = vmatprep.subr.mxu0 0.0
    %1027 = vmatpush1.msra.mxu0 0.0
    %1028 = vmatprep.subr.mxu0 0.0
    %1029 = vmatpush1.msra.mxu0 0.0
    %1030 = vmatprep.mubr.f32.mxu0 0.0
    %1031 = vmatmul.mubr.f32.gmra.mrb[0].mxu0 %v964
    %v1032 = vpop.f32.mrb[0].mxu0
    %v1033 = vadd.f32 0.0, %v1032
    %v1034 = vpop.f32.mrb[0].mxu0
    %1035 = vdwg.mxu0
    %1036 = vrot.lane.b32.xlu0 %v208, 64
    %v1037 = vpop.permute.xlu0 %1036
    %v1040 = vsel %vm221, %v878, 0
    %1042 = vmatprep.subr.mxu0 0.0
    %1043 = vmatpush1.msra.mxu0 %v1037
    %1044 = vmatprep.subr.mxu0 0.0
    %1045 = vmatpush1.msra.mxu0 0.0
    %1046 = vmatprep.subr.mxu0 0.0
    %1047 = vmatpush1.msra.mxu0 0.0
    %1048 = vmatprep.subr.mxu0 0.0
    %1049 = vmatpush1.msra.mxu0 0.0
    %1050 = vmatprep.subr.mxu0 0.0
    %1051 = vmatpush1.msra.mxu0 0.0
    %1052 = vmatprep.subr.mxu0 0.0
    %1053 = vmatpush1.msra.mxu0 0.0
    %1054 = vmatprep.subr.mxu0 0.0
    %1055 = vmatpush1.msra.mxu0 0.0
    %1056 = vmatprep.subr.mxu0 0.0
    %1057 = vmatpush1.msra.mxu0 0.0
    %1058 = vmatprep.subr.mxu0 0.0
    %1059 = vmatpush1.msra.mxu0 0.0
    %1060 = vmatprep.subr.mxu0 0.0
    %1061 = vmatpush1.msra.mxu0 0.0
    %1062 = vmatprep.subr.mxu0 0.0
    %1063 = vmatpush1.msra.mxu0 0.0
    %1064 = vmatprep.subr.mxu0 0.0
    %1065 = vmatpush1.msra.mxu0 0.0
    %1066 = vmatprep.subr.mxu0 0.0
    %1067 = vmatpush1.msra.mxu0 0.0
    %1068 = vmatprep.subr.mxu0 0.0
    %1069 = vmatpush1.msra.mxu0 0.0
    %1070 = vmatprep.subr.mxu0 0.0
    %1071 = vmatpush1.msra.mxu0 0.0
    %1072 = vmatprep.subr.mxu0 0.0
    %1073 = vmatpush1.msra.mxu0 0.0
    %1074 = vmatprep.subr.mxu0 0.0
    %1075 = vmatpush1.msra.mxu0 0.0
    %1076 = vmatprep.subr.mxu0 0.0
    %1077 = vmatpush1.msra.mxu0 0.0
    %1078 = vmatprep.subr.mxu0 0.0
    %1079 = vmatpush1.msra.mxu0 0.0
    %1080 = vmatprep.subr.mxu0 0.0
    %1081 = vmatpush1.msra.mxu0 0.0
    %1082 = vmatprep.subr.mxu0 0.0
    %1083 = vmatpush1.msra.mxu0 0.0
    %1084 = vmatprep.subr.mxu0 0.0
    %1085 = vmatpush1.msra.mxu0 0.0
    %1086 = vmatprep.subr.mxu0 0.0
    %1087 = vmatpush1.msra.mxu0 0.0
    %1088 = vmatprep.subr.mxu0 0.0
    %1089 = vmatpush1.msra.mxu0 0.0
    %1090 = vmatprep.subr.mxu0 0.0
    %1091 = vmatpush1.msra.mxu0 0.0
    %1092 = vmatprep.subr.mxu0 0.0
    %1093 = vmatpush1.msra.mxu0 0.0
    %1094 = vmatprep.subr.mxu0 0.0
    %1095 = vmatpush1.msra.mxu0 0.0
    %1096 = vmatprep.subr.mxu0 0.0
    %1097 = vmatpush1.msra.mxu0 0.0
    %1098 = vmatprep.subr.mxu0 0.0
    %1099 = vmatpush1.msra.mxu0 0.0
    %1100 = vmatprep.subr.mxu0 0.0
    %1101 = vmatpush1.msra.mxu0 0.0
    %1102 = vmatprep.subr.mxu0 0.0
    %1103 = vmatpush1.msra.mxu0 0.0
    %1104 = vmatprep.subr.mxu0 0.0
    %1105 = vmatpush1.msra.mxu0 0.0
    %1106 = vmatprep.mubr.f32.mxu0 0.0
    %1107 = vmatmul.mubr.f32.gmra.mrb[0].mxu0 %v1040
    %v1108 = vpop.f32.mrb[0].mxu0
    %v1109 = vadd.f32 0.0, %v1108
    %v1110 = vpop.f32.mrb[0].mxu0
    %1111 = vdwg.mxu0
    %1112 = vrot.lane.b32.xlu0 %v210, 64
    %v1113 = vpop.permute.xlu0 %1112
    %v1116 = vsel %vm221, %v879, 0
    %1118 = vmatprep.subr.mxu0 0.0
    %1119 = vmatpush1.msra.mxu0 %v1113
    %1120 = vmatprep.subr.mxu0 0.0
    %1121 = vmatpush1.msra.mxu0 0.0
    %1122 = vmatprep.subr.mxu0 0.0
    %1123 = vmatpush1.msra.mxu0 0.0
    %1124 = vmatprep.subr.mxu0 0.0
    %1125 = vmatpush1.msra.mxu0 0.0
    %1126 = vmatprep.subr.mxu0 0.0
    %1127 = vmatpush1.msra.mxu0 0.0
    %1128 = vmatprep.subr.mxu0 0.0
    %1129 = vmatpush1.msra.mxu0 0.0
    %1130 = vmatprep.subr.mxu0 0.0
    %1131 = vmatpush1.msra.mxu0 0.0
    %1132 = vmatprep.subr.mxu0 0.0
    %1133 = vmatpush1.msra.mxu0 0.0
    %1134 = vmatprep.subr.mxu0 0.0
    %1135 = vmatpush1.msra.mxu0 0.0
    %1136 = vmatprep.subr.mxu0 0.0
    %1137 = vmatpush1.msra.mxu0 0.0
    %1138 = vmatprep.subr.mxu0 0.0
    %1139 = vmatpush1.msra.mxu0 0.0
    %1140 = vmatprep.subr.mxu0 0.0
    %1141 = vmatpush1.msra.mxu0 0.0
    %1142 = vmatprep.subr.mxu0 0.0
    %1143 = vmatpush1.msra.mxu0 0.0
    %1144 = vmatprep.subr.mxu0 0.0
    %1145 = vmatpush1.msra.mxu0 0.0
    %1146 = vmatprep.subr.mxu0 0.0
    %1147 = vmatpush1.msra.mxu0 0.0
    %1148 = vmatprep.subr.mxu0 0.0
    %1149 = vmatpush1.msra.mxu0 0.0
    %1150 = vmatprep.subr.mxu0 0.0
    %1151 = vmatpush1.msra.mxu0 0.0
    %1152 = vmatprep.subr.mxu0 0.0
    %1153 = vmatpush1.msra.mxu0 0.0
    %1154 = vmatprep.subr.mxu0 0.0
    %1155 = vmatpush1.msra.mxu0 0.0
    %1156 = vmatprep.subr.mxu0 0.0
    %1157 = vmatpush1.msra.mxu0 0.0
    %1158 = vmatprep.subr.mxu0 0.0
    %1159 = vmatpush1.msra.mxu0 0.0
    %1160 = vmatprep.subr.mxu0 0.0
    %1161 = vmatpush1.msra.mxu0 0.0
    %1162 = vmatprep.subr.mxu0 0.0
    %1163 = vmatpush1.msra.mxu0 0.0
    %1164 = vmatprep.subr.mxu0 0.0
    %1165 = vmatpush1.msra.mxu0 0.0
    %1166 = vmatprep.subr.mxu0 0.0
    %1167 = vmatpush1.msra.mxu0 0.0
    %1168 = vmatprep.subr.mxu0 0.0
    %1169 = vmatpush1.msra.mxu0 0.0
    %1170 = vmatprep.subr.mxu0 0.0
    %1171 = vmatpush1.msra.mxu0 0.0
    %1172 = vmatprep.subr.mxu0 0.0
    %1173 = vmatpush1.msra.mxu0 0.0
    %1174 = vmatprep.subr.mxu0 0.0
    %1175 = vmatpush1.msra.mxu0 0.0
    %1176 = vmatprep.subr.mxu0 0.0
    %1177 = vmatpush1.msra.mxu0 0.0
    %1178 = vmatprep.subr.mxu0 0.0
    %1179 = vmatpush1.msra.mxu0 0.0
    %1180 = vmatprep.subr.mxu0 0.0
    %1181 = vmatpush1.msra.mxu0 0.0
    %1182 = vmatprep.mubr.f32.mxu0 0.0
    %1183 = vmatmul.mubr.f32.gmra.mrb[0].mxu0 %v1116
    %v1184 = vpop.f32.mrb[0].mxu0
    %v1185 = vadd.f32 0.0, %v1184
    %v1186 = vpop.f32.mrb[0].mxu0
    %1187 = vdwg.mxu0
    %1188 = vrot.lane.b32.xlu0 %v212, 64
    %v1189 = vpop.permute.xlu0 %1188
    %v1192 = vsel %vm221, %v880, 0
    %1194 = vmatprep.subr.mxu0 0.0
    %1195 = vmatpush1.msra.mxu0 %v1189
    %1196 = vmatprep.subr.mxu0 0.0
    %1197 = vmatpush1.msra.mxu0 0.0
    %1198 = vmatprep.subr.mxu0 0.0
    %1199 = vmatpush1.msra.mxu0 0.0
    %1200 = vmatprep.subr.mxu0 0.0
    %1201 = vmatpush1.msra.mxu0 0.0
    %1202 = vmatprep.subr.mxu0 0.0
    %1203 = vmatpush1.msra.mxu0 0.0
    %1204 = vmatprep.subr.mxu0 0.0
    %1205 = vmatpush1.msra.mxu0 0.0
    %1206 = vmatprep.subr.mxu0 0.0
    %1207 = vmatpush1.msra.mxu0 0.0
    %1208 = vmatprep.subr.mxu0 0.0
    %1209 = vmatpush1.msra.mxu0 0.0
    %1210 = vmatprep.subr.mxu0 0.0
    %1211 = vmatpush1.msra.mxu0 0.0
    %1212 = vmatprep.subr.mxu0 0.0
    %1213 = vmatpush1.msra.mxu0 0.0
    %1214 = vmatprep.subr.mxu0 0.0
    %1215 = vmatpush1.msra.mxu0 0.0
    %1216 = vmatprep.subr.mxu0 0.0
    %1217 = vmatpush1.msra.mxu0 0.0
    %1218 = vmatprep.subr.mxu0 0.0
    %1219 = vmatpush1.msra.mxu0 0.0
    %1220 = vmatprep.subr.mxu0 0.0
    %1221 = vmatpush1.msra.mxu0 0.0
    %1222 = vmatprep.subr.mxu0 0.0
    %1223 = vmatpush1.msra.mxu0 0.0
    %1224 = vmatprep.subr.mxu0 0.0
    %1225 = vmatpush1.msra.mxu0 0.0
    %1226 = vmatprep.subr.mxu0 0.0
    %1227 = vmatpush1.msra.mxu0 0.0
    %1228 = vmatprep.subr.mxu0 0.0
    %1229 = vmatpush1.msra.mxu0 0.0
    %1230 = vmatprep.subr.mxu0 0.0
    %1231 = vmatpush1.msra.mxu0 0.0
    %1232 = vmatprep.subr.mxu0 0.0
    %1233 = vmatpush1.msra.mxu0 0.0
    %1234 = vmatprep.subr.mxu0 0.0
    %1235 = vmatpush1.msra.mxu0 0.0
    %1236 = vmatprep.subr.mxu0 0.0
    %1237 = vmatpush1.msra.mxu0 0.0
    %1238 = vmatprep.subr.mxu0 0.0
    %1239 = vmatpush1.msra.mxu0 0.0
    %1240 = vmatprep.subr.mxu0 0.0
    %1241 = vmatpush1.msra.mxu0 0.0
    %1242 = vmatprep.subr.mxu0 0.0
    %1243 = vmatpush1.msra.mxu0 0.0
    %1244 = vmatprep.subr.mxu0 0.0
    %1245 = vmatpush1.msra.mxu0 0.0
    %1246 = vmatprep.subr.mxu0 0.0
    %1247 = vmatpush1.msra.mxu0 0.0
    %1248 = vmatprep.subr.mxu0 0.0
    %1249 = vmatpush1.msra.mxu0 0.0
    %1250 = vmatprep.subr.mxu0 0.0
    %1251 = vmatpush1.msra.mxu0 0.0
    %1252 = vmatprep.subr.mxu0 0.0
    %1253 = vmatpush1.msra.mxu0 0.0
    %1254 = vmatprep.subr.mxu0 0.0
    %1255 = vmatpush1.msra.mxu0 0.0
    %1256 = vmatprep.subr.mxu0 0.0
    %1257 = vmatpush1.msra.mxu0 0.0
    %1258 = vmatprep.mubr.f32.mxu0 0.0
    %1259 = vmatmul.mubr.f32.gmra.mrb[0].mxu0 %v1192
    %v1260 = vpop.f32.mrb[0].mxu0
    %v1261 = vadd.f32 0.0, %v1260
    %v1262 = vpop.f32.mrb[0].mxu0
    %1263 = vdwg.mxu0
    %1264 = vrot.lane.b32.xlu0 %v214, 64
    %v1265 = vpop.permute.xlu0 %1264
    %v1268 = vsel %vm221, %v881, 0
    %1270 = vmatprep.subr.mxu0 0.0
    %1271 = vmatpush1.msra.mxu0 %v1265
    %1272 = vmatprep.subr.mxu0 0.0
    %1273 = vmatpush1.msra.mxu0 0.0
    %1274 = vmatprep.subr.mxu0 0.0
    %1275 = vmatpush1.msra.mxu0 0.0
    %1276 = vmatprep.subr.mxu0 0.0
    %1277 = vmatpush1.msra.mxu0 0.0
    %1278 = vmatprep.subr.mxu0 0.0
    %1279 = vmatpush1.msra.mxu0 0.0
    %1280 = vmatprep.subr.mxu0 0.0
    %1281 = vmatpush1.msra.mxu0 0.0
    %1282 = vmatprep.subr.mxu0 0.0
    %1283 = vmatpush1.msra.mxu0 0.0
    %1284 = vmatprep.subr.mxu0 0.0
    %1285 = vmatpush1.msra.mxu0 0.0
    %1286 = vmatprep.subr.mxu0 0.0
    %1287 = vmatpush1.msra.mxu0 0.0
    %1288 = vmatprep.subr.mxu0 0.0
    %1289 = vmatpush1.msra.mxu0 0.0
    %1290 = vmatprep.subr.mxu0 0.0
    %1291 = vmatpush1.msra.mxu0 0.0
    %1292 = vmatprep.subr.mxu0 0.0
    %1293 = vmatpush1.msra.mxu0 0.0
    %1294 = vmatprep.subr.mxu0 0.0
    %1295 = vmatpush1.msra.mxu0 0.0
    %1296 = vmatprep.subr.mxu0 0.0
    %1297 = vmatpush1.msra.mxu0 0.0
    %1298 = vmatprep.subr.mxu0 0.0
    %1299 = vmatpush1.msra.mxu0 0.0
    %1300 = vmatprep.subr.mxu0 0.0
    %1301 = vmatpush1.msra.mxu0 0.0
    %1302 = vmatprep.subr.mxu0 0.0
    %1303 = vmatpush1.msra.mxu0 0.0
    %1304 = vmatprep.subr.mxu0 0.0
    %1305 = vmatpush1.msra.mxu0 0.0
    %1306 = vmatprep.subr.mxu0 0.0
    %1307 = vmatpush1.msra.mxu0 0.0
    %1308 = vmatprep.subr.mxu0 0.0
    %1309 = vmatpush1.msra.mxu0 0.0
    %1310 = vmatprep.subr.mxu0 0.0
    %1311 = vmatpush1.msra.mxu0 0.0
    %1312 = vmatprep.subr.mxu0 0.0
    %1313 = vmatpush1.msra.mxu0 0.0
    %1314 = vmatprep.subr.mxu0 0.0
    %1315 = vmatpush1.msra.mxu0 0.0
    %1316 = vmatprep.subr.mxu0 0.0
    %1317 = vmatpush1.msra.mxu0 0.0
    %1318 = vmatprep.subr.mxu0 0.0
    %1319 = vmatpush1.msra.mxu0 0.0
    %1320 = vmatprep.subr.mxu0 0.0
    %1321 = vmatpush1.msra.mxu0 0.0
    %1322 = vmatprep.subr.mxu0 0.0
    %1323 = vmatpush1.msra.mxu0 0.0
    %1324 = vmatprep.subr.mxu0 0.0
    %1325 = vmatpush1.msra.mxu0 0.0
    %1326 = vmatprep.subr.mxu0 0.0
    %1327 = vmatpush1.msra.mxu0 0.0
    %1328 = vmatprep.subr.mxu0 0.0
    %1329 = vmatpush1.msra.mxu0 0.0
    %1330 = vmatprep.subr.mxu0 0.0
    %1331 = vmatpush1.msra.mxu0 0.0
    %1332 = vmatprep.subr.mxu0 0.0
    %1333 = vmatpush1.msra.mxu0 0.0
    %1334 = vmatprep.mubr.f32.mxu0 0.0
    %1335 = vmatmul.mubr.f32.gmra.mrb[0].mxu0 %v1268
    %v1336 = vpop.f32.mrb[0].mxu0
    %v1337 = vadd.f32 0.0, %v1336
    %v1338 = vpop.f32.mrb[0].mxu0
    %1339 = vdwg.mxu0
    %1340 = vrot.lane.b32.xlu0 %v216, 64
    %v1341 = vpop.permute.xlu0 %1340
    %v1344 = vsel %vm221, %v882, 0
    %1346 = vmatprep.subr.mxu0 0.0
    %1347 = vmatpush1.msra.mxu0 %v1341
    %1348 = vmatprep.subr.mxu0 0.0
    %1349 = vmatpush1.msra.mxu0 0.0
    %1350 = vmatprep.subr.mxu0 0.0
    %1351 = vmatpush1.msra.mxu0 0.0
    %1352 = vmatprep.subr.mxu0 0.0
    %1353 = vmatpush1.msra.mxu0 0.0
    %1354 = vmatprep.subr.mxu0 0.0
    %1355 = vmatpush1.msra.mxu0 0.0
    %1356 = vmatprep.subr.mxu0 0.0
    %1357 = vmatpush1.msra.mxu0 0.0
    %1358 = vmatprep.subr.mxu0 0.0
    %1359 = vmatpush1.msra.mxu0 0.0
    %1360 = vmatprep.subr.mxu0 0.0
    %1361 = vmatpush1.msra.mxu0 0.0
    %1362 = vmatprep.subr.mxu0 0.0
    %1363 = vmatpush1.msra.mxu0 0.0
    %1364 = vmatprep.subr.mxu0 0.0
    %1365 = vmatpush1.msra.mxu0 0.0
    %1366 = vmatprep.subr.mxu0 0.0
    %1367 = vmatpush1.msra.mxu0 0.0
    %1368 = vmatprep.subr.mxu0 0.0
    %1369 = vmatpush1.msra.mxu0 0.0
    %1370 = vmatprep.subr.mxu0 0.0
    %1371 = vmatpush1.msra.mxu0 0.0
    %1372 = vmatprep.subr.mxu0 0.0
    %1373 = vmatpush1.msra.mxu0 0.0
    %1374 = vmatprep.subr.mxu0 0.0
    %1375 = vmatpush1.msra.mxu0 0.0
    %1376 = vmatprep.subr.mxu0 0.0
    %1377 = vmatpush1.msra.mxu0 0.0
    %1378 = vmatprep.subr.mxu0 0.0
    %1379 = vmatpush1.msra.mxu0 0.0
    %1380 = vmatprep.subr.mxu0 0.0
    %1381 = vmatpush1.msra.mxu0 0.0
    %1382 = vmatprep.subr.mxu0 0.0
    %1383 = vmatpush1.msra.mxu0 0.0
    %1384 = vmatprep.subr.mxu0 0.0
    %1385 = vmatpush1.msra.mxu0 0.0
    %1386 = vmatprep.subr.mxu0 0.0
    %1387 = vmatpush1.msra.mxu0 0.0
    %1388 = vmatprep.subr.mxu0 0.0
    %1389 = vmatpush1.msra.mxu0 0.0
    %1390 = vmatprep.subr.mxu0 0.0
    %1391 = vmatpush1.msra.mxu0 0.0
    %1392 = vmatprep.subr.mxu0 0.0
    %1393 = vmatpush1.msra.mxu0 0.0
    %1394 = vmatprep.subr.mxu0 0.0
    %1395 = vmatpush1.msra.mxu0 0.0
    %1396 = vmatprep.subr.mxu0 0.0
    %1397 = vmatpush1.msra.mxu0 0.0
    %1398 = vmatprep.subr.mxu0 0.0
    %1399 = vmatpush1.msra.mxu0 0.0
    %1400 = vmatprep.subr.mxu0 0.0
    %1401 = vmatpush1.msra.mxu0 0.0
    %1402 = vmatprep.subr.mxu0 0.0
    %1403 = vmatpush1.msra.mxu0 0.0
    %1404 = vmatprep.subr.mxu0 0.0
    %1405 = vmatpush1.msra.mxu0 0.0
    %1406 = vmatprep.subr.mxu0 0.0
    %1407 = vmatpush1.msra.mxu0 0.0
    %1408 = vmatprep.subr.mxu0 0.0
    %1409 = vmatpush1.msra.mxu0 0.0
    %1410 = vmatprep.mubr.f32.mxu0 0.0
    %1411 = vmatmul.mubr.f32.gmra.mrb[0].mxu0 %v1344
    %v1412 = vpop.f32.mrb[0].mxu0
    %v1413 = vadd.f32 0.0, %v1412
    %v1414 = vpop.f32.mrb[0].mxu0
    %1415 = vdwg.mxu0
    %1416 = vrot.lane.b32.xlu0 %v218, 64
    %v1417 = vpop.permute.xlu0 %1416
    %v1420 = vsel %vm221, %v883, 0
    %1422 = vmatprep.subr.mxu0 0.0
    %1423 = vmatpush1.msra.mxu0 %v1417
    %1424 = vmatprep.subr.mxu0 0.0
    %1425 = vmatpush1.msra.mxu0 0.0
    %1426 = vmatprep.subr.mxu0 0.0
    %1427 = vmatpush1.msra.mxu0 0.0
    %1428 = vmatprep.subr.mxu0 0.0
    %1429 = vmatpush1.msra.mxu0 0.0
    %1430 = vmatprep.subr.mxu0 0.0
    %1431 = vmatpush1.msra.mxu0 0.0
    %1432 = vmatprep.subr.mxu0 0.0
    %1433 = vmatpush1.msra.mxu0 0.0
    %1434 = vmatprep.subr.mxu0 0.0
    %1435 = vmatpush1.msra.mxu0 0.0
    %1436 = vmatprep.subr.mxu0 0.0
    %1437 = vmatpush1.msra.mxu0 0.0
    %1438 = vmatprep.subr.mxu0 0.0
    %1439 = vmatpush1.msra.mxu0 0.0
    %1440 = vmatprep.subr.mxu0 0.0
    %1441 = vmatpush1.msra.mxu0 0.0
    %1442 = vmatprep.subr.mxu0 0.0
    %1443 = vmatpush1.msra.mxu0 0.0
    %1444 = vmatprep.subr.mxu0 0.0
    %1445 = vmatpush1.msra.mxu0 0.0
    %1446 = vmatprep.subr.mxu0 0.0
    %1447 = vmatpush1.msra.mxu0 0.0
    %1448 = vmatprep.subr.mxu0 0.0
    %1449 = vmatpush1.msra.mxu0 0.0
    %1450 = vmatprep.subr.mxu0 0.0
    %1451 = vmatpush1.msra.mxu0 0.0
    %1452 = vmatprep.subr.mxu0 0.0
    %1453 = vmatpush1.msra.mxu0 0.0
    %1454 = vmatprep.subr.mxu0 0.0
    %1455 = vmatpush1.msra.mxu0 0.0
    %1456 = vmatprep.subr.mxu0 0.0
    %1457 = vmatpush1.msra.mxu0 0.0
    %1458 = vmatprep.subr.mxu0 0.0
    %1459 = vmatpush1.msra.mxu0 0.0
    %1460 = vmatprep.subr.mxu0 0.0
    %1461 = vmatpush1.msra.mxu0 0.0
    %1462 = vmatprep.subr.mxu0 0.0
    %1463 = vmatpush1.msra.mxu0 0.0
    %1464 = vmatprep.subr.mxu0 0.0
    %1465 = vmatpush1.msra.mxu0 0.0
    %1466 = vmatprep.subr.mxu0 0.0
    %1467 = vmatpush1.msra.mxu0 0.0
    %1468 = vmatprep.subr.mxu0 0.0
    %1469 = vmatpush1.msra.mxu0 0.0
    %1470 = vmatprep.subr.mxu0 0.0
    %1471 = vmatpush1.msra.mxu0 0.0
    %1472 = vmatprep.subr.mxu0 0.0
    %1473 = vmatpush1.msra.mxu0 0.0
    %1474 = vmatprep.subr.mxu0 0.0
    %1475 = vmatpush1.msra.mxu0 0.0
    %1476 = vmatprep.subr.mxu0 0.0
    %1477 = vmatpush1.msra.mxu0 0.0
    %1478 = vmatprep.subr.mxu0 0.0
    %1479 = vmatpush1.msra.mxu0 0.0
    %1480 = vmatprep.subr.mxu0 0.0
    %1481 = vmatpush1.msra.mxu0 0.0
    %1482 = vmatprep.subr.mxu0 0.0
    %1483 = vmatpush1.msra.mxu0 0.0
    %1484 = vmatprep.subr.mxu0 0.0
    %1485 = vmatpush1.msra.mxu0 0.0
    %1486 = vmatprep.mubr.f32.mxu0 0.0
    %1487 = vmatmul.mubr.f32.gmra.mrb[0].mxu0 %v1420
    %v1488 = vpop.f32.mrb[0].mxu0
    %v1489 = vadd.f32 0.0, %v1488
    %v1490 = vpop.f32.mrb[0].mxu0
    %1491 = vdwg.mxu0
    %1494 = vrot.lane.b32.xlu0 %v1109, 8
    %v1495 = vpop.permute.xlu0 %1494
    %1496 = vrot.lane.b32.xlu0 %v1185, 8
    %v1497 = vpop.permute.xlu0 %1496
    %1502 = vrot.lane.b32.xlu0 %v1261, 16
    %v1503 = vpop.permute.xlu0 %1502
    %1504 = vrot.lane.b32.xlu0 %v1337, 16
    %v1505 = vpop.permute.xlu0 %1504
    %1510 = vrot.lane.b32.xlu0 %v1413, 24
    %v1511 = vpop.permute.xlu0 %1510
    %1512 = vrot.lane.b32.xlu0 %v1489, 24
    %v1513 = vpop.permute.xlu0 %1512
    %v1516 = vsel %vm221, %v957, %v1495
    %v1517 = vsel %vm221, %v1033, %v1497
    %vm1518 = vcmask 130048
    %v1519 = vsel %vm1518, %v1516, %v1503
    %v1520 = vsel %vm1518, %v1517, %v1505
    %vm1521 = vcmask 195584
    %v1522 = vsel %vm1521, %v1519, %v1511
    %v1523 = vsel %vm1521, %v1520, %v1513
    %v1524 = vld [vmem:[%s5] sm:$0xff]
    %v1525 = vld [vmem:[%s5 + $0x8] sm:$0xff]
    %v1526 = vld [vmem:[%s5 + $0x10] sm:$0xff]
    %v1527 = vld [vmem:[%s5 + $0x18] sm:$0xff]
    %v1528 = vld [vmem:[%s6] sm:$0x1]
    %v1530 = vlaneseq
    %v1531 = vshrl.u32 %v1530, 7
    %v1532 = vsub.s32 0, %v1531
    %v1533 = vrot.slane %v1528, %v1532
    %v1536 = vsel %vm69, %v1522, 0
    %v1539 = vsel %vm69, %v1523, 0
    %1541 = vmatprep.subr.mxu0 0.0
    %1542 = vmatpush1.msra.mxu0 %v1524
    %1543 = vmatprep.subr.mxu0 0.0
    %1544 = vmatpush1.msra.mxu0 %v1525
    %1545 = vmatprep.subr.mxu0 0.0
    %1546 = vmatpush1.msra.mxu0 %v1526
    %1547 = vmatprep.subr.mxu0 0.0
    %1548 = vmatpush1.msra.mxu0 %v1527
    %1549 = vmatprep.subr.mxu0 0.0
    %1550 = vmatpush1.msra.mxu0 0.0
    %1551 = vmatprep.subr.mxu0 0.0
    %1552 = vmatpush1.msra.mxu0 0.0
    %1553 = vmatprep.subr.mxu0 0.0
    %1554 = vmatpush1.msra.mxu0 0.0
    %1555 = vmatprep.subr.mxu0 0.0
    %1556 = vmatpush1.msra.mxu0 0.0
    %1557 = vmatprep.subr.mxu0 0.0
    %1558 = vmatpush1.msra.mxu0 0.0
    %1559 = vmatprep.subr.mxu0 0.0
    %1560 = vmatpush1.msra.mxu0 0.0
    %1561 = vmatprep.subr.mxu0 0.0
    %1562 = vmatpush1.msra.mxu0 0.0
    %1563 = vmatprep.subr.mxu0 0.0
    %1564 = vmatpush1.msra.mxu0 0.0
    %1565 = vmatprep.subr.mxu0 0.0
    %1566 = vmatpush1.msra.mxu0 0.0
    %1567 = vmatprep.subr.mxu0 0.0
    %1568 = vmatpush1.msra.mxu0 0.0
    %1569 = vmatprep.subr.mxu0 0.0
    %1570 = vmatpush1.msra.mxu0 0.0
    %1571 = vmatprep.subr.mxu0 0.0
    %1572 = vmatpush1.msra.mxu0 0.0
    %1573 = vmatprep.subr.mxu0 0.0
    %1574 = vmatpush1.msra.mxu0 0.0
    %1575 = vmatprep.subr.mxu0 0.0
    %1576 = vmatpush1.msra.mxu0 0.0
    %1577 = vmatprep.subr.mxu0 0.0
    %1578 = vmatpush1.msra.mxu0 0.0
    %1579 = vmatprep.subr.mxu0 0.0
    %1580 = vmatpush1.msra.mxu0 0.0
    %1581 = vmatprep.subr.mxu0 0.0
    %1582 = vmatpush1.msra.mxu0 0.0
    %1583 = vmatprep.subr.mxu0 0.0
    %1584 = vmatpush1.msra.mxu0 0.0
    %1585 = vmatprep.subr.mxu0 0.0
    %1586 = vmatpush1.msra.mxu0 0.0
    %1587 = vmatprep.subr.mxu0 0.0
    %1588 = vmatpush1.msra.mxu0 0.0
    %1589 = vmatprep.subr.mxu0 0.0
    %1590 = vmatpush1.msra.mxu0 0.0
    %1591 = vmatprep.subr.mxu0 0.0
    %1592 = vmatpush1.msra.mxu0 0.0
    %1593 = vmatprep.subr.mxu0 0.0
    %1594 = vmatpush1.msra.mxu0 0.0
    %1595 = vmatprep.subr.mxu0 0.0
    %1596 = vmatpush1.msra.mxu0 0.0
    %1597 = vmatprep.subr.mxu0 0.0
    %1598 = vmatpush1.msra.mxu0 0.0
    %1599 = vmatprep.subr.mxu0 0.0
    %1600 = vmatpush1.msra.mxu0 0.0
    %1601 = vmatprep.subr.mxu0 0.0
    %1602 = vmatpush1.msra.mxu0 0.0
    %1603 = vmatprep.subr.mxu0 0.0
    %1604 = vmatpush1.msra.mxu0 0.0
    %1605 = vmatprep.mubr.f32.mxu0 0.0
    %1606 = vmatmul.mubr.f32.gmra.mrb[0].mxu0 %v1536
    %v1607 = vpop.f32.mrb[0].mxu0
    %v1608 = vadd.f32 %v1533, %v1607
    %v1609 = vpop.f32.mrb[0].mxu0
    %1610 = vmatprep.mubr.f32.mxu0 0.0
    %1611 = vmatmul.mubr.f32.gmra.mrb[0].mxu0 %v1539
    %v1612 = vpop.f32.mrb[0].mxu0
    %v1613 = vadd.f32 %v1533, %v1612
    %v1614 = vpop.f32.mrb[0].mxu0
    %1615 = vdwg.mxu0
    %v1616 = vadd.f32 %v59, %v1608
    %v1617 = vadd.f32 %v60, %v1613
    %v1618 = vld [vmem:[%s7] sm:$0x1]
    %v1619 = vld [vmem:[%s8] sm:$0x1]
    %v1620 = vsel %vm69, %v1616, 0.0
    %1621 = vadd.xlane.f32.xlu0 %v1620
    %v1622 = vpop.xlane.xlu0 %1621
    %v1623 = vsel %vm69, %v1617, 0.0
    %1624 = vadd.xlane.f32.xlu0 %v1623
    %v1625 = vpop.xlane.xlu0 %1624
    %v1626 = vmul.f32 %v1622, %v76
    %v1627 = vmul.f32 %v1625, %v76
    %v1628 = vsub.f32 %v1616, %v1626
    %v1629 = vsub.f32 %v1617, %v1627
    %v1630 = vmul.f32 %v1628, %v1628
    %v1631 = vmul.f32 %v1629, %v1629
    %v1632 = vsel %vm69, %v1630, 0.0
    %1633 = vadd.xlane.f32.xlu0 %v1632
    %v1634 = vpop.xlane.xlu0 %1633
    %v1635 = vsel %vm69, %v1631, 0.0
    %1636 = vadd.xlane.f32.xlu0 %v1635
    %v1637 = vpop.xlane.xlu0 %1636
    %v1638 = vmul.f32 %v1634, %v76
    %v1639 = vmul.f32 %v1637, %v76
    %v1640 = vadd.f32 %v1638, 1e-12
    %v1641 = vadd.f32 %v1639, 1e-12
    %v1642 = vrsqrt.pop %v1640
    %v1643 = vrsqrt.pop %v1641
    %v1644 = vmul.f32 %v1628, %v1642
    %v1645 = vmul.f32 %v1629, %v1643
    %v1647 = vlaneseq
    %v1648 = vshrl.u32 %v1647, 7
    %v1649 = vsub.s32 0, %v1648
    %v1650 = vrot.slane %v1618, %v1649
    %v1652 = vmul.f32 %v1644, %v1650
    %v1653 = vmul.f32 %v1645, %v1650
    %v1655 = vlaneseq
    %v1656 = vshrl.u32 %v1655, 7
    %v1657 = vsub.s32 0, %v1656
    %v1658 = vrot.slane %v1619, %v1657
    %v1660 = vadd.f32 %v1652, %v1658
    %v1661 = vadd.f32 %v1653, %v1658
    %v1662 = vld [vmem:[%s9] sm:$0xff]
    %v1663 = vld [vmem:[%s9 + $0x8] sm:$0xff]
    %v1664 = vld [vmem:[%s9 + $0x10] sm:$0xff]
    %v1665 = vld [vmem:[%s9 + $0x18] sm:$0xff]
    %v1666 = vld [vmem:[%s10] sm:$0x1]
    %v1668 = vlaneseq
    %v1669 = vshrl.u32 %v1668, 7
    %v1670 = vsub.s32 0, %v1669
    %v1671 = vrot.slane %v1666, %v1670
    %v1674 = vsel %vm69, %v1660, 0
    %v1677 = vsel %vm69, %v1661, 0
    %1679 = vmatprep.subr.mxu0 0.0
    %1680 = vmatpush1.msra.mxu0 %v1662
    %1681 = vmatprep.subr.mxu0 0.0
    %1682 = vmatpush1.msra.mxu0 %v1663
    %1683 = vmatprep.subr.mxu0 0.0
    %1684 = vmatpush1.msra.mxu0 %v1664
    %1685 = vmatprep.subr.mxu0 0.0
    %1686 = vmatpush1.msra.mxu0 %v1665
    %1687 = vmatprep.subr.mxu0 0.0
    %1688 = vmatpush1.msra.mxu0 0.0
    %1689 = vmatprep.subr.mxu0 0.0
    %1690 = vmatpush1.msra.mxu0 0.0
    %1691 = vmatprep.subr.mxu0 0.0
    %1692 = vmatpush1.msra.mxu0 0.0
    %1693 = vmatprep.subr.mxu0 0.0
    %1694 = vmatpush1.msra.mxu0 0.0
    %1695 = vmatprep.subr.mxu0 0.0
    %1696 = vmatpush1.msra.mxu0 0.0
    %1697 = vmatprep.subr.mxu0 0.0
    %1698 = vmatpush1.msra.mxu0 0.0
    %1699 = vmatprep.subr.mxu0 0.0
    %1700 = vmatpush1.msra.mxu0 0.0
    %1701 = vmatprep.subr.mxu0 0.0
    %1702 = vmatpush1.msra.mxu0 0.0
    %1703 = vmatprep.subr.mxu0 0.0
    %1704 = vmatpush1.msra.mxu0 0.0
    %1705 = vmatprep.subr.mxu0 0.0
    %1706 = vmatpush1.msra.mxu0 0.0
    %1707 = vmatprep.subr.mxu0 0.0
    %1708 = vmatpush1.msra.mxu0 0.0
    %1709 = vmatprep.subr.mxu0 0.0
    %1710 = vmatpush1.msra.mxu0 0.0
    %1711 = vmatprep.subr.mxu0 0.0
    %1712 = vmatpush1.msra.mxu0 0.0
    %1713 = vmatprep.subr.mxu0 0.0
    %1714 = vmatpush1.msra.mxu0 0.0
    %1715 = vmatprep.subr.mxu0 0.0
    %1716 = vmatpush1.msra.mxu0 0.0
    %1717 = vmatprep.subr.mxu0 0.0
    %1718 = vmatpush1.msra.mxu0 0.0
    %1719 = vmatprep.subr.mxu0 0.0
    %1720 = vmatpush1.msra.mxu0 0.0
    %1721 = vmatprep.subr.mxu0 0.0
    %1722 = vmatpush1.msra.mxu0 0.0
    %1723 = vmatprep.subr.mxu0 0.0
    %1724 = vmatpush1.msra.mxu0 0.0
    %1725 = vmatprep.subr.mxu0 0.0
    %1726 = vmatpush1.msra.mxu0 0.0
    %1727 = vmatprep.subr.mxu0 0.0
    %1728 = vmatpush1.msra.mxu0 0.0
    %1729 = vmatprep.subr.mxu0 0.0
    %1730 = vmatpush1.msra.mxu0 0.0
    %1731 = vmatprep.subr.mxu0 0.0
    %1732 = vmatpush1.msra.mxu0 0.0
    %1733 = vmatprep.subr.mxu0 0.0
    %1734 = vmatpush1.msra.mxu0 0.0
    %1735 = vmatprep.subr.mxu0 0.0
    %1736 = vmatpush1.msra.mxu0 0.0
    %1737 = vmatprep.subr.mxu0 0.0
    %1738 = vmatpush1.msra.mxu0 0.0
    %1739 = vmatprep.subr.mxu0 0.0
    %1740 = vmatpush1.msra.mxu0 0.0
    %1741 = vmatprep.subr.mxu0 0.0
    %1742 = vmatpush1.msra.mxu0 0.0
    %1743 = vmatprep.mubr.f32.mxu0 0.0
    %1744 = vmatmul.mubr.f32.gmra.mrb[0].mxu0 %v1674
    %v1745 = vpop.f32.mrb[0].mxu0
    %v1746 = vadd.f32 %v1671, %v1745
    %v1747 = vpop.f32.mrb[0].mxu0
    %1748 = vmatprep.mubr.f32.mxu0 0.0
    %1749 = vmatmul.mubr.f32.gmra.mrb[0].mxu0 %v1677
    %v1750 = vpop.f32.mrb[0].mxu0
    %v1751 = vadd.f32 %v1671, %v1750
    %v1752 = vpop.f32.mrb[0].mxu0
    %1753 = vdwg.mxu0
    %v1754 = vmul.f32 %v1746, %v1746
    %v1755 = vmul.f32 %v1751, %v1751
    %v1756 = vmul.f32 %v1746, %v1754
    %v1757 = vmul.f32 %v1751, %v1755
    %v1758 = vmul.f32 %v1756, 0.044715
    %v1759 = vmul.f32 %v1757, 0.044715
    %v1760 = vadd.f32 %v1746, %v1758
    %v1761 = vadd.f32 %v1751, %v1759
    %v1762 = vmul.f32 %v1760, 0.7978846
    %v1763 = vmul.f32 %v1761, 0.7978846
    %v1764 = vtanh.pop %v1762
    %v1765 = vtanh.pop %v1763
    %v1766 = vadd.f32 %v1764, 1.0
    %v1767 = vadd.f32 %v1765, 1.0
    %v1768 = vmul.f32 %v1766, 0.5
    %v1769 = vmul.f32 %v1767, 0.5
    %v1770 = vmul.f32 %v1746, %v1768
    %v1771 = vmul.f32 %v1751, %v1769
    %v1772 = vld [vmem:[%s11] sm:$0xff]
    %v1773 = vld [vmem:[%s11 + $0x8] sm:$0xff]
    %v1774 = vld [vmem:[%s11 + $0x10] sm:$0xff]
    %v1775 = vld [vmem:[%s11 + $0x18] sm:$0xff]
    %v1776 = vld [vmem:[%s11 + $0x20] sm:$0xff]
    %v1777 = vld [vmem:[%s11 + $0x28] sm:$0xff]
    %v1778 = vld [vmem:[%s11 + $0x30] sm:$0xff]
    %v1779 = vld [vmem:[%s11 + $0x38] sm:$0xff]
    %v1780 = vld [vmem:[%s12] sm:$0x1]
    %v1782 = vlaneseq
    %v1783 = vshrl.u32 %v1782, 7
    %v1784 = vsub.s32 0, %v1783
    %v1785 = vrot.slane %v1780, %v1784
    %vm1787 = vcmask 523264
    %v1789 = vsel %vm1787, %v1770, 0
    %v1792 = vsel %vm1787, %v1771, 0
    %1794 = vmatprep.subr.mxu0 0.0
    %1795 = vmatpush1.msra.mxu0 %v1772
    %1796 = vmatprep.subr.mxu0 0.0
    %1797 = vmatpush1.msra.mxu0 %v1773
    %1798 = vmatprep.subr.mxu0 0.0
    %1799 = vmatpush1.msra.mxu0 %v1774
    %1800 = vmatprep.subr.mxu0 0.0
    %1801 = vmatpush1.msra.mxu0 %v1775
    %1802 = vmatprep.subr.mxu0 0.0
    %1803 = vmatpush1.msra.mxu0 %v1776
    %1804 = vmatprep.subr.mxu0 0.0
    %1805 = vmatpush1.msra.mxu0 %v1777
    %1806 = vmatprep.subr.mxu0 0.0
    %1807 = vmatpush1.msra.mxu0 %v1778
    %1808 = vmatprep.subr.mxu0 0.0
    %1809 = vmatpush1.msra.mxu0 %v1779
    %1810 = vmatprep.subr.mxu0 0.0
    %1811 = vmatpush1.msra.mxu0 0.0
    %1812 = vmatprep.subr.mxu0 0.0
    %1813 = vmatpush1.msra.mxu0 0.0
    %1814 = vmatprep.subr.mxu0 0.0
    %1815 = vmatpush1.msra.mxu0 0.0
    %1816 = vmatprep.subr.mxu0 0.0
    %1817 = vmatpush1.msra.mxu0 0.0
    %1818 = vmatprep.subr.mxu0 0.0
    %1819 = vmatpush1.msra.mxu0 0.0
    %1820 = vmatprep.subr.mxu0 0.0
    %1821 = vmatpush1.msra.mxu0 0.0
    %1822 = vmatprep.subr.mxu0 0.0
    %1823 = vmatpush1.msra.mxu0 0.0
    %1824 = vmatprep.subr.mxu0 0.0
    %1825 = vmatpush1.msra.mxu0 0.0
    %1826 = vmatprep.subr.mxu0 0.0
    %1827 = vmatpush1.msra.mxu0 0.0
    %1828 = vmatprep.subr.mxu0 0.0
    %1829 = vmatpush1.msra.mxu0 0.0
    %1830 = vmatprep.subr.mxu0 0.0
    %1831 = vmatpush1.msra.mxu0 0.0
    %1832 = vmatprep.subr.mxu0 0.0
    %1833 = vmatpush1.msra.mxu0 0.0
    %1834 = vmatprep.subr.mxu0 0.0
    %1835 = vmatpush1.msra.mxu0 0.0
    %1836 = vmatprep.subr.mxu0 0.0
    %1837 = vmatpush1.msra.mxu0 0.0
    %1838 = vmatprep.subr.mxu0 0.0
    %1839 = vmatpush1.msra.mxu0 0.0
    %1840 = vmatprep.subr.mxu0 0.0
    %1841 = vmatpush1.msra.mxu0 0.0
    %1842 = vmatprep.subr.mxu0 0.0
    %1843 = vmatpush1.msra.mxu0 0.0
    %1844 = vmatprep.subr.mxu0 0.0
    %1845 = vmatpush1.msra.mxu0 0.0
    %1846 = vmatprep.subr.mxu0 0.0
    %1847 = vmatpush1.msra.mxu0 0.0
    %1848 = vmatprep.subr.mxu0 0.0
    %1849 = vmatpush1.msra.mxu0 0.0
    %1850 = vmatprep.subr.mxu0 0.0
    %1851 = vmatpush1.msra.mxu0 0.0
    %1852 = vmatprep.subr.mxu0 0.0
    %1853 = vmatpush1.msra.mxu0 0.0
    %1854 = vmatprep.subr.mxu0 0.0
    %1855 = vmatpush1.msra.mxu0 0.0
    %1856 = vmatprep.subr.mxu0 0.0
    %1857 = vmatpush1.msra.mxu0 0.0
    %1858 = vmatprep.mubr.f32.mxu0 0.0
    %1859 = vmatmul.mubr.f32.gmra.mrb[0].mxu0 %v1789
    %v1860 = vpop.f32.mrb[0].mxu0
    %v1861 = vadd.f32 %v1785, %v1860
    %v1862 = vpop.f32.mrb[0].mxu0
    %1863 = vmatprep.mubr.f32.mxu0 0.0
    %1864 = vmatmul.mubr.f32.gmra.mrb[0].mxu0 %v1792
    %v1865 = vpop.f32.mrb[0].mxu0
    %v1866 = vadd.f32 %v1785, %v1865
    %v1867 = vpop.f32.mrb[0].mxu0
    %1868 = vdwg.mxu0
    %v1869 = vadd.f32 %v1616, %v1861
    %v1870 = vadd.f32 %v1617, %v1866
    %1871 = vst.msk [vmem:[#allocation5] sm:$0xff] %vm69, %v1869
    %1872 = vst.msk [vmem:[#allocation5 + $0x8] sm:$0xff] %vm69, %v1870
    // Predicated region
    $region58: #{tpu_custom_call.1} parent=1 // pred_check
      _
    $region59: #{tpu_custom_call.1} parent=1 // pred_check_branch
      %1874 = sbr.rel (0) target = $region61
    $region60: #{tpu_custom_call.1} parent=1 // pred_region
      %s1876 = ssub.s32 256, 256
      %1877 = vsyncadd [#allocation4], %s1876
      %s1878 = sshll.u32 [#allocation5], 4
      %s1879 = int_to_ptr.vmem [resolvable:$true] %s1878
      %1884 = dma.vmem_to_hbm [thread:$0]  %s1879, 256, %s13, [#allocation4], 128, 128, 8
    $region61: #{tpu_custom_call.1} parent=1 // pred_fallthru
      _
    // Predicated region
    $region62: #{tpu_custom_call.1} parent=1 // pred_check
      _
    $region63: #{tpu_custom_call.1} parent=1 // pred_check_branch
      %1886 = sbr.rel (0) target = $region65
    $region64: #{tpu_custom_call.1} parent=1 // pred_region
      %1887 = dma.done [#allocation4], 256
    $region65: #{tpu_custom_call.1} parent=1 // pred_fallthru
      _
    %1888 = vsyncpa [#allocation3], 1
    %1889 = vsyncpa [#allocation4], 1

</llo_original>
